<compile_context>
chip_gen: v6e
topology: v6e:2x2x1
jax: 0.10.0
libtpu: 0.0.40
codegen_flags: <defaults>
</compile_context>

<pallas_src>
import jax
import jax.numpy as jnp
from jax import lax
from jax.experimental import pallas as pl
from jax.experimental.pallas import tpu as pltpu


def basic_block_kernel(x_ref, w1_ref, w2_ref, sb_ref, out_ref, pad):
    """nb batch images per grid step, lane-dense fused-(W*C) layout.

    x_ref   : (nb, H, W*C)   bf16  input slab (also the residual identity)
    w1_ref  : (3, W*C, W*C)  bf16  banded conv1 weights, one matrix per ky tap
    w2_ref  : (3, W*C, W*C)  bf16  banded conv2 weights
    sb_ref  : (4, W*C)       f32   [scale1; bias1; scale2; bias2], tiled over W
    out_ref : (nb, H, W*C)   bf16
    pad     : (nb, H+2, W*C) f32   shared VMEM scratch with per-image 1-row
                                   zero halos (x for conv1, then reused for y1)
    """
    nb, H, WC = out_ref.shape
    M = nb * H                      # rows per MXU matmul (>= 128 by construction)

    # Only the per-image halo rows need to be zero; the interior is fully
    # overwritten below.  Re-zeroing them every step keeps the kernel correct
    # even if the parallel batch axis is split across TensorCores (v7x).
    zrow = jnp.zeros((nb, 1, WC), pad.dtype)
    pad[:, 0:1, :] = zrow
    pad[:, H + 1:H + 2, :] = zrow

    x = x_ref[...]                                   # (nb, H, WC) bf16
    pad[:, 1:1 + H, :] = x.astype(pad.dtype)

    sb = sb_ref[...]                                 # (4, WC) f32

    def conv3x3_rows(w_ref):
        # One 3x3 conv as 3 banded MXU matmuls (one per ky tap): the kx taps
        # and the W-boundary zero padding are folded into the (W*C, W*C)
        # weights, and the ky taps are 1-row-shifted reads of the halo'd
        # scratch.  Each matmul streams M = nb*H rows with K = N = W*C,
        # accumulating in f32.
        acc = jnp.dot(pad[:, 0:H, :].reshape(M, WC).astype(jnp.bfloat16),
                      w_ref[0], preferred_element_type=jnp.float32)
        for dy in (1, 2):
            acc = acc + jnp.dot(
                pad[:, dy:dy + H, :].reshape(M, WC).astype(jnp.bfloat16),
                w_ref[dy], preferred_element_type=jnp.float32)
        return acc                                   # (M, WC) f32

    # ---- conv1 -> bn1 -> relu (scale/bias pre-tiled across W: lane-dense) ----
    y1 = jnp.maximum(conv3x3_rows(w1_ref) * sb[0:1, :] + sb[1:2, :], 0.0)

    # Reuse the same scratch for conv2's input (the x copy is dead once the
    # three conv1 matmuls have consumed it); halo rows are still zero.
    pad[:, 1:1 + H, :] = y1.reshape(nb, H, WC)

    # ---- conv2 -> bn2 -> +identity (same input block) -> relu ----
    y2 = conv3x3_rows(w2_ref) * sb[2:3, :] + sb[3:4, :]
    out = jnp.maximum(y2 + x.reshape(M, WC).astype(jnp.float32), 0.0)
    out_ref[...] = out.astype(out_ref.dtype).reshape(nb, H, WC)


def _fold_bn(bn, W, eps):
    """Eval-mode BatchNorm -> per-channel scale/bias, tiled across W so the
    in-kernel elementwise math is lane-dense on the fused (W*C) axis."""
    gamma, beta, mean, var = bn
    scale = gamma / jnp.sqrt(var + eps)
    bias = beta - mean * scale
    return jnp.tile(scale, W), jnp.tile(bias, W)


def _make_banded(w, W):
    """(3,3,Ci,Co) HWIO conv weights -> (3, W*Ci, W*Co) banded ("block-
    Toeplitz") matrices: Wb[dy, wi*Ci+ci, wo*Co+co] = w[dy, wi-wo+1, ci, co]
    for 0 <= wi-wo+1 <= 2, else 0.  Folds the kx taps AND the W-boundary zero
    padding into the matmul."""
    ci_n, co_n = w.shape[2], w.shape[3]
    wi = jnp.arange(W)[:, None]
    wo = jnp.arange(W)[None, :]
    dx = wi - wo + 1
    valid = ((dx >= 0) & (dx <= 2)).astype(w.dtype)
    dxc = jnp.clip(dx, 0, 2)
    blocks = w[:, dxc] * valid[None, :, :, None, None]          # (3,W,W,Ci,Co)
    return blocks.transpose(0, 1, 3, 2, 4).reshape(3, W * ci_n, W * co_n)


def _pick_nb(N, H):
    """Smallest divisor of N giving nb*H >= 128 matmul rows (else N)."""
    for nb in range(1, N + 1):
        if N % nb == 0 and nb * H >= 128:
            return nb
    return N


def basic_block_slab(x_slab, w1b, w2b, sb, *, nb):
    """Fused-layout entry point: x_slab (N, H, W*C) bf16 -> bf16 slab.
    Chain BasicBlocks on this to avoid NCHW<->slab transposes between blocks."""
    N, H, WC = x_slab.shape
    assert N % nb == 0

    flops = 2 * 3 * 2 * N * H * WC * WC            # 2 convs x 3 banded matmuls
    bytes_accessed = (N * H * WC * 2               # bf16 input
                      + 2 * 3 * WC * WC * 2        # bf16 banded weights
                      + 4 * WC * 4                 # f32 scale/bias
                      + N * H * WC * 2)            # bf16 output

    return pl.pallas_call(
        basic_block_kernel,
        out_shape=jax.ShapeDtypeStruct((N, H, WC), jnp.bfloat16),
        grid_spec=pltpu.PrefetchScalarGridSpec(
            num_scalar_prefetch=0,
            grid=(N // nb,),
            in_specs=[
                pl.BlockSpec((nb, H, WC), lambda n: (n, 0, 0)),
                pl.BlockSpec((3, WC, WC), lambda n: (0, 0, 0)),
                pl.BlockSpec((3, WC, WC), lambda n: (0, 0, 0)),
                pl.BlockSpec((4, WC), lambda n: (0, 0)),
            ],
            out_specs=pl.BlockSpec((nb, H, WC), lambda n: (n, 0, 0)),
            scratch_shapes=[
                pltpu.VMEM((nb, H + 2, WC), jnp.float32),  # shared halo scratch
            ],
        ),
        compiler_params=pltpu.CompilerParams(
            dimension_semantics=("parallel",)),
        cost_estimate=pl.CostEstimate(
            flops=flops, transcendentals=0, bytes_accessed=bytes_accessed),
    )(x_slab, w1b, w2b, sb)


@jax.jit
def basic_block_pallas(x_nchw, w1, bn1, w2, bn2, eps=1e-5):
    """NCHW f32 interface matching the PyTorch BasicBlock (eval mode).
    x_nchw: (N, C, H, W) f32.  w*: (3, 3, Cin, Cout) HWIO.  bn*: (g, b, mean, var)."""
    N, C, H, W = x_nchw.shape
    Cout = w1.shape[-1]
    assert w1.shape == (3, 3, C, Cout) and w2.shape == (3, 3, Cout, Cout)
    assert Cout == C, "identity residual requires inplanes == planes (no downsample)"
    WC = W * C

    # NCHW -> NHWC -> fused (N, H, W*C) slab, bf16 activations for HBM / MXU.
    # TODO(synk): if the surrounding model adopts the slab layout end-to-end,
    # call basic_block_slab directly and drop these two HBM transpose passes.
    x_slab = jnp.transpose(x_nchw, (0, 2, 3, 1)).reshape(N, H, WC).astype(jnp.bfloat16)

    s1, b1 = _fold_bn(bn1, W, eps)
    s2, b2 = _fold_bn(bn2, W, eps)
    sb = jnp.stack([s1, b1, s2, b2]).astype(jnp.float32)            # (4, W*C)
    w1b = _make_banded(w1.astype(jnp.bfloat16), W)                  # (3, W*C, W*C)
    w2b = _make_banded(w2.astype(jnp.bfloat16), W)                  # (3, W*C, W*C)

    out_slab = basic_block_slab(x_slab, w1b, w2b, sb, nb=_pick_nb(N, H))

    # bf16 slab -> NHWC -> NCHW f32 to match the PyTorch interface.
    return jnp.transpose(out_slab.reshape(N, H, W, C), (0, 3, 1, 2)).astype(jnp.float32)


def _reference(x_nchw, w1, bn1, w2, bn2, eps=1e-5):
    """Pure-JAX f32 reference (lax conv) for a sanity check."""
    def conv3x3(x, w):  # x NCHW, w HWIO
        return lax.conv_general_dilated(
            x, w, window_strides=(1, 1), padding=((1, 1), (1, 1)),
            dimension_numbers=("NCHW", "HWIO", "NCHW"))

    def bn(x, p):
        gamma, beta, mean, var = p
        scale = (gamma / jnp.sqrt(var + eps)).reshape(1, -1, 1, 1)
        bias = (beta - mean * gamma / jnp.sqrt(var + eps)).reshape(1, -1, 1, 1)
        return x * scale + bias

    out = jnp.maximum(bn(conv3x3(x_nchw, w1), bn1), 0.0)
    out = bn(conv3x3(out, w2), bn2)
    return jnp.maximum(out + x_nchw, 0.0)


if __name__ == "__main__":
    key = jax.random.PRNGKey(0)
    # inplanes == planes == 8, W*C == 128 (one full lane width), nb*H == 128
    # rows per MXU matmul, single grid step.
    N, C, H, W = 8, 8, 16, 16
    k = jax.random.split(key, 8)

    x = jax.random.normal(k[0], (N, C, H, W), jnp.float32)

    w1 = jax.random.normal(k[1], (3, 3, C, C), jnp.float32) * 0.1
    w2 = jax.random.normal(k[2], (3, 3, C, C), jnp.float32) * 0.1
    bn1 = (1.0 + 0.1 * jax.random.normal(k[3], (C,), jnp.float32),     # gamma
           0.1 * jax.random.normal(k[4], (C,), jnp.float32),           # beta
           0.1 * jax.random.normal(k[5], (C,), jnp.float32),           # running_mean
           jnp.abs(jax.random.normal(k[6], (C,), jnp.float32)) + 0.5)  # running_var
    bn2 = (jnp.ones((C,), jnp.float32),
           jnp.zeros((C,), jnp.float32),
           0.1 * jax.random.normal(k[7], (C,), jnp.float32),
           jnp.ones((C,), jnp.float32))

    out = jax.block_until_ready(basic_block_pallas(x, w1, bn1, w2, bn2))

    ref = _reference(x, w1, bn1, w2, bn2)
    assert out.shape == (N, C, H, W)
    # bf16 activations/weights/output (f32 accumulation) -> looser tolerance.
    assert jnp.allclose(out, ref, atol=5e-2, rtol=5e-2), \
        f"max diff {jnp.max(jnp.abs(out - ref))}"

    print("KERNEL_OK")
</pallas_src>

<mosaic_0001>
module attributes {stable_mosaic.version = 11 : i64} {
  func.func @basic_block_kernel(%arg0: i32, %arg1: memref<8x16x128xbf16, #tpu.memory_space<vmem>>, %arg2: memref<3x128x128xbf16, #tpu.memory_space<vmem>>, %arg3: memref<3x128x128xbf16, #tpu.memory_space<vmem>>, %arg4: memref<4x128xf32, #tpu.memory_space<vmem>>, %arg5: memref<8x16x128xbf16, #tpu.memory_space<vmem>>, %arg6: memref<8x18x128xf32, #tpu.memory_space<vmem>>) attributes {dimension_semantics = [#tpu.dimension_semantics<parallel>], iteration_bounds = array<i64: 1>, scalar_prefetch = 0 : i64, scratch_operands = 1 : i64, tpu.core_type = #tpu.core_type<tc>, window_params = [{transform_indices = @transform_0, window_bounds = array<i64: 8, 16, 128>}, {pipeline_mode = #tpu.pipeline_mode<synchronous>, transform_indices = @transform_1, window_bounds = array<i64: 3, 128, 128>}, {pipeline_mode = #tpu.pipeline_mode<synchronous>, transform_indices = @transform_2, window_bounds = array<i64: 3, 128, 128>}, {pipeline_mode = #tpu.pipeline_mode<synchronous>, transform_indices = @transform_3, window_bounds = array<i64: 4, 128>}, {transform_indices = @transform_4, window_bounds = array<i64: 8, 16, 128>}]} {
    %cst = arith.constant 0.000000e+00 : f32
    %0 = vector.broadcast %cst : f32 to vector<8x1x128xf32>
    %c0 = arith.constant 0 : index
    %c0_0 = arith.constant 0 : index
    %c0_1 = arith.constant 0 : index
    %1 = vector.load %arg6[%c0, %c0_0, %c0_1] : memref<8x18x128xf32, #tpu.memory_space<vmem>>, vector<8x1x128xf32>
    tpu.vector_store %arg6[%c0, %c0_0, %c0_1], %0 {strides = array<i32>} : memref<8x18x128xf32, #tpu.memory_space<vmem>>, vector<8x1x128xf32>,
    %c0_2 = arith.constant 0 : index
    %c17 = arith.constant 17 : index
    %c0_3 = arith.constant 0 : index
    %2 = vector.load %arg6[%c0_2, %c17, %c0_3] : memref<8x18x128xf32, #tpu.memory_space<vmem>>, vector<8x1x128xf32>
    tpu.vector_store %arg6[%c0_2, %c17, %c0_3], %0 {strides = array<i32>} : memref<8x18x128xf32, #tpu.memory_space<vmem>>, vector<8x1x128xf32>,
    %c0_4 = arith.constant 0 : index
    %c0_5 = arith.constant 0 : index
    %c0_6 = arith.constant 0 : index
    %3 = vector.load %arg1[%c0_4, %c0_5, %c0_6] : memref<8x16x128xbf16, #tpu.memory_space<vmem>>, vector<8x16x128xbf16>
    %4 = arith.extf %3 : vector<8x16x128xbf16> to vector<8x16x128xf32>
    %c0_7 = arith.constant 0 : index
    %c1 = arith.constant 1 : index
    %c0_8 = arith.constant 0 : index
    %5 = vector.load %arg6[%c0_7, %c1, %c0_8] : memref<8x18x128xf32, #tpu.memory_space<vmem>>, vector<8x16x128xf32>
    tpu.vector_store %arg6[%c0_7, %c1, %c0_8], %4 {strides = array<i32>} : memref<8x18x128xf32, #tpu.memory_space<vmem>>, vector<8x16x128xf32>,
    %c0_9 = arith.constant 0 : index
    %c0_10 = arith.constant 0 : index
    %6 = vector.load %arg4[%c0_9, %c0_10] : memref<4x128xf32, #tpu.memory_space<vmem>>, vector<4x128xf32>
    %c0_11 = arith.constant 0 : index
    %c0_12 = arith.constant 0 : index
    %c0_13 = arith.constant 0 : index
    %7 = vector.load %arg6[%c0_11, %c0_12, %c0_13] : memref<8x18x128xf32, #tpu.memory_space<vmem>>, vector<8x16x128xf32>
    %8 = vector.shape_cast %7 : vector<8x16x128xf32> to vector<128x128xf32>
    %9 = arith.truncf %8 : vector<128x128xf32> to vector<128x128xbf16>
    %c0_14 = arith.constant 0 : index
    %c0_15 = arith.constant 0 : index
    %c0_16 = arith.constant 0 : index
    %10 = vector.load %arg2[%c0_14, %c0_15, %c0_16] : memref<3x128x128xbf16, #tpu.memory_space<vmem>>, vector<1x128x128xbf16>
    %11 = vector.shape_cast %10 : vector<1x128x128xbf16> to vector<128x128xbf16>
    %cst_17 = arith.constant dense<0.000000e+00> : vector<128x128xf32>
    %12 = tpu.matmul %9, %11, %cst_17 {dimension_numbers = #tpu.dot_dimension_numbers<[1], [0], [0], [1], [0, 0, 1, 1], [], []>} : vector<128x128xbf16>, vector<128x128xbf16>, vector<128x128xf32> -> vector<128x128xf32>
    %c0_18 = arith.constant 0 : index
    %c1_19 = arith.constant 1 : index
    %c0_20 = arith.constant 0 : index
    %13 = vector.load %arg6[%c0_18, %c1_19, %c0_20] : memref<8x18x128xf32, #tpu.memory_space<vmem>>, vector<8x16x128xf32>
    %14 = vector.shape_cast %13 : vector<8x16x128xf32> to vector<128x128xf32>
    %15 = arith.truncf %14 : vector<128x128xf32> to vector<128x128xbf16>
    %c1_21 = arith.constant 1 : index
    %c0_22 = arith.constant 0 : index
    %c0_23 = arith.constant 0 : index
    %16 = vector.load %arg2[%c1_21, %c0_22, %c0_23] : memref<3x128x128xbf16, #tpu.memory_space<vmem>>, vector<1x128x128xbf16>
    %17 = vector.shape_cast %16 : vector<1x128x128xbf16> to vector<128x128xbf16>
    %cst_24 = arith.constant dense<0.000000e+00> : vector<128x128xf32>
    %18 = tpu.matmul %15, %17, %cst_24 {dimension_numbers = #tpu.dot_dimension_numbers<[1], [0], [0], [1], [0, 0, 1, 1], [], []>} : vector<128x128xbf16>, vector<128x128xbf16>, vector<128x128xf32> -> vector<128x128xf32>
    %19 = arith.addf %12, %18 : vector<128x128xf32>
    %c0_25 = arith.constant 0 : index
    %c2 = arith.constant 2 : index
    %c0_26 = arith.constant 0 : index
    %20 = vector.load %arg6[%c0_25, %c2, %c0_26] : memref<8x18x128xf32, #tpu.memory_space<vmem>>, vector<8x16x128xf32>
    %21 = vector.shape_cast %20 : vector<8x16x128xf32> to vector<128x128xf32>
    %22 = arith.truncf %21 : vector<128x128xf32> to vector<128x128xbf16>
    %c2_27 = arith.constant 2 : index
    %c0_28 = arith.constant 0 : index
    %c0_29 = arith.constant 0 : index
    %23 = vector.load %arg2[%c2_27, %c0_28, %c0_29] : memref<3x128x128xbf16, #tpu.memory_space<vmem>>, vector<1x128x128xbf16>
    %24 = vector.shape_cast %23 : vector<1x128x128xbf16> to vector<128x128xbf16>
    %cst_30 = arith.constant dense<0.000000e+00> : vector<128x128xf32>
    %25 = tpu.matmul %22, %24, %cst_30 {dimension_numbers = #tpu.dot_dimension_numbers<[1], [0], [0], [1], [0, 0, 1, 1], [], []>} : vector<128x128xbf16>, vector<128x128xbf16>, vector<128x128xf32> -> vector<128x128xf32>
    %26 = arith.addf %19, %25 : vector<128x128xf32>
    %27 = vector.extract_strided_slice %6 {offsets = [0, 0], sizes = [1, 128], strides = [1, 1]} : vector<4x128xf32> to vector<1x128xf32>
    %28 = vector.broadcast %27 : vector<1x128xf32> to vector<128x128xf32>
    %29 = arith.mulf %26, %28 : vector<128x128xf32>
    %30 = vector.extract_strided_slice %6 {offsets = [1, 0], sizes = [1, 128], strides = [1, 1]} : vector<4x128xf32> to vector<1x128xf32>
    %31 = vector.broadcast %30 : vector<1x128xf32> to vector<128x128xf32>
    %32 = arith.addf %29, %31 : vector<128x128xf32>
    %cst_31 = arith.constant 0.000000e+00 : f32
    %33 = vector.broadcast %cst_31 : f32 to vector<128x128xf32>
    %34 = arith.maximumf %32, %33 : vector<128x128xf32>
    %35 = vector.shape_cast %34 : vector<128x128xf32> to vector<8x16x128xf32>
    %c0_32 = arith.constant 0 : index
    %c1_33 = arith.constant 1 : index
    %c0_34 = arith.constant 0 : index
    %36 = vector.load %arg6[%c0_32, %c1_33, %c0_34] : memref<8x18x128xf32, #tpu.memory_space<vmem>>, vector<8x16x128xf32>
    tpu.vector_store %arg6[%c0_32, %c1_33, %c0_34], %35 {strides = array<i32>} : memref<8x18x128xf32, #tpu.memory_space<vmem>>, vector<8x16x128xf32>,
    %c0_35 = arith.constant 0 : index
    %c0_36 = arith.constant 0 : index
    %c0_37 = arith.constant 0 : index
    %37 = vector.load %arg6[%c0_35, %c0_36, %c0_37] : memref<8x18x128xf32, #tpu.memory_space<vmem>>, vector<8x16x128xf32>
    %38 = vector.shape_cast %37 : vector<8x16x128xf32> to vector<128x128xf32>
    %39 = arith.truncf %38 : vector<128x128xf32> to vector<128x128xbf16>
    %c0_38 = arith.constant 0 : index
    %c0_39 = arith.constant 0 : index
    %c0_40 = arith.constant 0 : index
    %40 = vector.load %arg3[%c0_38, %c0_39, %c0_40] : memref<3x128x128xbf16, #tpu.memory_space<vmem>>, vector<1x128x128xbf16>
    %41 = vector.shape_cast %40 : vector<1x128x128xbf16> to vector<128x128xbf16>
    %cst_41 = arith.constant dense<0.000000e+00> : vector<128x128xf32>
    %42 = tpu.matmul %39, %41, %cst_41 {dimension_numbers = #tpu.dot_dimension_numbers<[1], [0], [0], [1], [0, 0, 1, 1], [], []>} : vector<128x128xbf16>, vector<128x128xbf16>, vector<128x128xf32> -> vector<128x128xf32>
    %c0_42 = arith.constant 0 : index
    %c1_43 = arith.constant 1 : index
    %c0_44 = arith.constant 0 : index
    %43 = vector.load %arg6[%c0_42, %c1_43, %c0_44] : memref<8x18x128xf32, #tpu.memory_space<vmem>>, vector<8x16x128xf32>
    %44 = vector.shape_cast %43 : vector<8x16x128xf32> to vector<128x128xf32>
    %45 = arith.truncf %44 : vector<128x128xf32> to vector<128x128xbf16>
    %c1_45 = arith.constant 1 : index
    %c0_46 = arith.constant 0 : index
    %c0_47 = arith.constant 0 : index
    %46 = vector.load %arg3[%c1_45, %c0_46, %c0_47] : memref<3x128x128xbf16, #tpu.memory_space<vmem>>, vector<1x128x128xbf16>
    %47 = vector.shape_cast %46 : vector<1x128x128xbf16> to vector<128x128xbf16>
    %cst_48 = arith.constant dense<0.000000e+00> : vector<128x128xf32>
    %48 = tpu.matmul %45, %47, %cst_48 {dimension_numbers = #tpu.dot_dimension_numbers<[1], [0], [0], [1], [0, 0, 1, 1], [], []>} : vector<128x128xbf16>, vector<128x128xbf16>, vector<128x128xf32> -> vector<128x128xf32>
    %49 = arith.addf %42, %48 : vector<128x128xf32>
    %c0_49 = arith.constant 0 : index
    %c2_50 = arith.constant 2 : index
    %c0_51 = arith.constant 0 : index
    %50 = vector.load %arg6[%c0_49, %c2_50, %c0_51] : memref<8x18x128xf32, #tpu.memory_space<vmem>>, vector<8x16x128xf32>
    %51 = vector.shape_cast %50 : vector<8x16x128xf32> to vector<128x128xf32>
    %52 = arith.truncf %51 : vector<128x128xf32> to vector<128x128xbf16>
    %c2_52 = arith.constant 2 : index
    %c0_53 = arith.constant 0 : index
    %c0_54 = arith.constant 0 : index
    %53 = vector.load %arg3[%c2_52, %c0_53, %c0_54] : memref<3x128x128xbf16, #tpu.memory_space<vmem>>, vector<1x128x128xbf16>
    %54 = vector.shape_cast %53 : vector<1x128x128xbf16> to vector<128x128xbf16>
    %cst_55 = arith.constant dense<0.000000e+00> : vector<128x128xf32>
    %55 = tpu.matmul %52, %54, %cst_55 {dimension_numbers = #tpu.dot_dimension_numbers<[1], [0], [0], [1], [0, 0, 1, 1], [], []>} : vector<128x128xbf16>, vector<128x128xbf16>, vector<128x128xf32> -> vector<128x128xf32>
    %56 = arith.addf %49, %55 : vector<128x128xf32>
    %57 = vector.extract_strided_slice %6 {offsets = [2, 0], sizes = [1, 128], strides = [1, 1]} : vector<4x128xf32> to vector<1x128xf32>
    %58 = vector.broadcast %57 : vector<1x128xf32> to vector<128x128xf32>
    %59 = arith.mulf %56, %58 : vector<128x128xf32>
    %60 = vector.extract_strided_slice %6 {offsets = [3, 0], sizes = [1, 128], strides = [1, 1]} : vector<4x128xf32> to vector<1x128xf32>
    %61 = vector.broadcast %60 : vector<1x128xf32> to vector<128x128xf32>
    %62 = arith.addf %59, %61 : vector<128x128xf32>
    %63 = vector.shape_cast %3 : vector<8x16x128xbf16> to vector<128x128xbf16>
    %64 = arith.extf %63 : vector<128x128xbf16> to vector<128x128xf32>
    %65 = arith.addf %62, %64 : vector<128x128xf32>
    %cst_56 = arith.constant 0.000000e+00 : f32
    %66 = vector.broadcast %cst_56 : f32 to vector<128x128xf32>
    %67 = arith.maximumf %65, %66 : vector<128x128xf32>
    %68 = arith.truncf %67 : vector<128x128xf32> to vector<128x128xbf16>
    %69 = vector.shape_cast %68 : vector<128x128xbf16> to vector<8x16x128xbf16>
    %c0_57 = arith.constant 0 : index
    %c0_58 = arith.constant 0 : index
    %c0_59 = arith.constant 0 : index
    %70 = vector.load %arg5[%c0_57, %c0_58, %c0_59] : memref<8x16x128xbf16, #tpu.memory_space<vmem>>, vector<8x16x128xbf16>
    tpu.vector_store %arg5[%c0_57, %c0_58, %c0_59], %69 {strides = array<i32>} : memref<8x16x128xbf16, #tpu.memory_space<vmem>>, vector<8x16x128xbf16>,
    return
  }
  func.func @transform_0(%arg0: i32) -> (i32, i32, i32) {
    %c0_i32 = arith.constant 0 : i32
    %c0_i32_0 = arith.constant 0 : i32
    %c0_i32_1 = arith.constant 0 : i32
    return %arg0, %c0_i32, %c0_i32_0 : i32, i32, i32
  }
  func.func @transform_1(%arg0: i32) -> (i32, i32, i32) {
    %c0_i32 = arith.constant 0 : i32
    %c0_i32_0 = arith.constant 0 : i32
    %c0_i32_1 = arith.constant 0 : i32
    %c0_i32_2 = arith.constant 0 : i32
    return %c0_i32, %c0_i32_0, %c0_i32_1 : i32, i32, i32
  }
  func.func @transform_2(%arg0: i32) -> (i32, i32, i32) {
    %c0_i32 = arith.constant 0 : i32
    %c0_i32_0 = arith.constant 0 : i32
    %c0_i32_1 = arith.constant 0 : i32
    %c0_i32_2 = arith.constant 0 : i32
    return %c0_i32, %c0_i32_0, %c0_i32_1 : i32, i32, i32
  }
  func.func @transform_3(%arg0: i32) -> (i32, i32) {
    %c0_i32 = arith.constant 0 : i32
    %c0_i32_0 = arith.constant 0 : i32
    %c0_i32_1 = arith.constant 0 : i32
    return %c0_i32, %c0_i32_0 : i32, i32
  }
  func.func @transform_4(%arg0: i32) -> (i32, i32, i32) {
    %c0_i32 = arith.constant 0 : i32
    %c0_i32_0 = arith.constant 0 : i32
    %c0_i32_1 = arith.constant 0 : i32
    return %arg0, %c0_i32, %c0_i32_0 : i32, i32, i32
  }
}

</mosaic_0001>

<llo_original>
// kernel: tile.23
$region0: #{tile.23}
  #allocation0 [shape = 's32[1]{0}', space=sflag, size = 0x4, scoped, tag = 'scoped memory for tile.23']
  %s0 = inlined_call_operand.vmem [shape: f32[8], index: 0, kind: input, shape index: {}]
  %s1 = inlined_call_operand.vmem [shape: f32[16,8], index: 1, kind: output, shape index: {}]
  // Predicated region
  $region2: #{tile.23} parent=0 // pred_check
    _
  $region3: #{tile.23} parent=0 // pred_check_branch
    %3 = sbr.rel (0) target = $region5
  $region4: #{tile.23} parent=0 // pred_region
    _
  $region5: #{tile.23} parent=0 // pred_fallthru
    _
  %v4 = vld [vmem:[%s0] ss:$0 sm:$0xff]
  %5 = vst [vmem:[%s1] sm:$0xff] %v4
  %s6 = scalar_lea.vmem %s1, 8
  %7 = vst [vmem:[%s6] sm:$0xff] %v4

// kernel: tile.36
$region0: #{tile.36}
  %s0 = inlined_call_operand.vmem [shape: f32[16,8], index: 0, kind: input, shape index: {}]
  %s1 = inlined_call_operand.vmem [shape: f32[1,128], index: 1, kind: output, shape index: {}]
  $region1: #{tile.36} parent=0
    #allocation0 [shape = 'u8[4096]{0}', space=vmem, size = 0x1000, scoped, tag = 'scoped mem for output reshape']
    %v2 = vld [vmem:[%s0] sm:$0x1]
    %vm3 = vcmask 64512
    %4 = vst.msk [vmem:[#allocation0] sm:$0x1] %vm3, %v2
    %s5 = scalar_lea.vmem %s0, 15
    %v6 = vld [vmem:[%s5] sm:$0x1]
    %7 = vrot.lane.b32.xlu0 %v6, 120
    %v8 = vpop.permute.xlu0 %7
    %vm9 = vcmask 1048512
    %10 = vst.msk [vmem:[#allocation0] sm:$0x1] %vm9, %v8
    %s11 = scalar_lea.vmem %s0, 14
    %v12 = vld [vmem:[%s11] sm:$0x1]
    %13 = vrot.lane.b32.xlu0 %v12, 112
    %v14 = vpop.permute.xlu0 %13
    %vm15 = vcmask 982912
    %16 = vst.msk [vmem:[#allocation0] sm:$0x1] %vm15, %v14
    %s17 = scalar_lea.vmem %s0, 13
    %v18 = vld [vmem:[%s17] sm:$0x1]
    %19 = vrot.lane.b32.xlu0 %v18, 104
    %v20 = vpop.permute.xlu0 %19
    %vm21 = vcmask 917312
    %22 = vst.msk [vmem:[#allocation0] sm:$0x1] %vm21, %v20
    %s23 = scalar_lea.vmem %s0, 12
    %v24 = vld [vmem:[%s23] sm:$0x1]
    %25 = vrot.lane.b32.xlu0 %v24, 96
    %v26 = vpop.permute.xlu0 %25
    %vm27 = vcmask 851712
    %28 = vst.msk [vmem:[#allocation0] sm:$0x1] %vm27, %v26
    %s29 = scalar_lea.vmem %s0, 11
    %v30 = vld [vmem:[%s29] sm:$0x1]
    %31 = vrot.lane.b32.xlu0 %v30, 88
    %v32 = vpop.permute.xlu0 %31
    %vm33 = vcmask 786112
    %34 = vst.msk [vmem:[#allocation0] sm:$0x1] %vm33, %v32
    %s35 = scalar_lea.vmem %s0, 10
    %v36 = vld [vmem:[%s35] sm:$0x1]
    %37 = vrot.lane.b32.xlu0 %v36, 80
    %v38 = vpop.permute.xlu0 %37
    %vm39 = vcmask 720512
    %40 = vst.msk [vmem:[#allocation0] sm:$0x1] %vm39, %v38
    %s41 = scalar_lea.vmem %s0, 9
    %v42 = vld [vmem:[%s41] sm:$0x1]
    %43 = vrot.lane.b32.xlu0 %v42, 72
    %v44 = vpop.permute.xlu0 %43
    %vm45 = vcmask 654912
    %46 = vst.msk [vmem:[#allocation0] sm:$0x1] %vm45, %v44
    %s47 = scalar_lea.vmem %s0, 8
    %v48 = vld [vmem:[%s47] sm:$0x1]
    %49 = vrot.lane.b32.xlu0 %v48, 64
    %v50 = vpop.permute.xlu0 %49
    %vm51 = vcmask 589312
    %52 = vst.msk [vmem:[#allocation0] sm:$0x1] %vm51, %v50
    %s53 = scalar_lea.vmem %s0, 7
    %v54 = vld [vmem:[%s53] sm:$0x1]
    %55 = vrot.lane.b32.xlu0 %v54, 56
    %v56 = vpop.permute.xlu0 %55
    %vm57 = vcmask 523712
    %58 = vst.msk [vmem:[#allocation0] sm:$0x1] %vm57, %v56
    %s59 = scalar_lea.vmem %s0, 6
    %v60 = vld [vmem:[%s59] sm:$0x1]
    %61 = vrot.lane.b32.xlu0 %v60, 48
    %v62 = vpop.permute.xlu0 %61
    %vm63 = vcmask 458112
    %64 = vst.msk [vmem:[#allocation0] sm:$0x1] %vm63, %v62
    %s65 = scalar_lea.vmem %s0, 5
    %v66 = vld [vmem:[%s65] sm:$0x1]
    %67 = vrot.lane.b32.xlu0 %v66, 40
    %v68 = vpop.permute.xlu0 %67
    %vm69 = vcmask 392512
    %70 = vst.msk [vmem:[#allocation0] sm:$0x1] %vm69, %v68
    %s71 = scalar_lea.vmem %s0, 4
    %v72 = vld [vmem:[%s71] sm:$0x1]
    %73 = vrot.lane.b32.xlu0 %v72, 32
    %v74 = vpop.permute.xlu0 %73
    %vm75 = vcmask 326912
    %76 = vst.msk [vmem:[#allocation0] sm:$0x1] %vm75, %v74
    %s77 = scalar_lea.vmem %s0, 3
    %v78 = vld [vmem:[%s77] sm:$0x1]
    %79 = vrot.lane.b32.xlu0 %v78, 24
    %v80 = vpop.permute.xlu0 %79
    %vm81 = vcmask 261312
    %82 = vst.msk [vmem:[#allocation0] sm:$0x1] %vm81, %v80
    %s83 = scalar_lea.vmem %s0, 2
    %v84 = vld [vmem:[%s83] sm:$0x1]
    %85 = vrot.lane.b32.xlu0 %v84, 16
    %v86 = vpop.permute.xlu0 %85
    %vm87 = vcmask 195712
    %88 = vst.msk [vmem:[#allocation0] sm:$0x1] %vm87, %v86
    %s89 = scalar_lea.vmem %s0, 1
    %v90 = vld [vmem:[%s89] sm:$0x1]
    %91 = vrot.lane.b32.xlu0 %v90, 8
    %v92 = vpop.permute.xlu0 %91
    %vm93 = vcmask 130112
    %94 = vst.msk [vmem:[#allocation0] sm:$0x1] %vm93, %v92
    %s96 = sshll.u32 1, 1
    %s97 = ssub.s32 %s96, 1
    %v99 = vld [vmem:[#allocation0] sm:%s97]
    %s100 = sshll.u32 1, 1
    %s101 = ssub.s32 %s100, 1
    %102 = vst [vmem:[%s1] sm:%s101] %v99

// kernel: basic_block_pallas.1
$region0: #{basic_block_pallas.1}
  #allocation0 [shape = 'u32[]', space=smem, size = 0x4, offset = 0x4, fixed_abs, tag = 'smem constant byte address 0x4 - core index']
  #allocation1 [shape = 'u32[144,128]{1,0:T(1,128)}', space=vmem, size = 0x12000, scoped, tag = 'internal scratch']
  #allocation2 [shape = 'f32[8,18,128]{2,1,0:T(8,128)}', space=vmem, size = 0x18000, scoped, tag = 'scratch operand']
  %s0 = inlined_call_operand.vmem [shape: bf16[8,16,128], index: 0, kind: input, shape index: {}]
  %s1 = inlined_call_operand.vmem [shape: bf16[3,128,128], index: 1, kind: input, shape index: {}]
  %s2 = inlined_call_operand.vmem [shape: bf16[3,128,128], index: 2, kind: input, shape index: {}]
  %s3 = inlined_call_operand.vmem [shape: f32[4,128], index: 3, kind: input, shape index: {}]
  %s4 = inlined_call_operand.vmem [shape: bf16[8,16,128], index: 4, kind: output, shape index: {}]
  %s5 = sld [smem:[#allocation0]]
  $region26: #{basic_block_pallas.1} parent=0
    _
  %s7 = ssub.s32 1, %s5
  %s8 = scalar_select 0, %s7, %s5
  // Predicated region
  $region2: #{basic_block_pallas.1} parent=0 // pred_check
    _
  $region3: #{basic_block_pallas.1} parent=0 // pred_check_branch
    %10 = sbr.rel (0) target = $region5
  $region4: #{basic_block_pallas.1} parent=0 // pred_region
    _
  $region5: #{basic_block_pallas.1} parent=0 // pred_fallthru
    _
  // Predicated region
  $region6: #{basic_block_pallas.1} parent=0 // pred_check
    _
  $region7: #{basic_block_pallas.1} parent=0 // pred_check_branch
    %12 = sbr.rel (0) target = $region9
  $region8: #{basic_block_pallas.1} parent=0 // pred_region
    _
  $region9: #{basic_block_pallas.1} parent=0 // pred_fallthru
    _
  // Predicated region
  $region10: #{basic_block_pallas.1} parent=0 // pred_check
    _
  $region11: #{basic_block_pallas.1} parent=0 // pred_check_branch
    %14 = sbr.rel (0) target = $region13
  $region12: #{basic_block_pallas.1} parent=0 // pred_region
    _
  $region13: #{basic_block_pallas.1} parent=0 // pred_fallthru
    _
  // Predicated region
  $region14: #{basic_block_pallas.1} parent=0 // pred_check
    _
  $region15: #{basic_block_pallas.1} parent=0 // pred_check_branch
    %16 = sbr.rel (0) target = $region17
  $region16: #{basic_block_pallas.1} parent=0 // pred_region
    _
  $region17: #{basic_block_pallas.1} parent=0 // pred_fallthru
    _
  %18 = vst [vmem:[#allocation2] sm:$0x1] 0.0
  %19 = vst [vmem:[#allocation2 + $0x18] sm:$0x1] 0.0
  %20 = vst [vmem:[#allocation2 + $0x30] sm:$0x1] 0.0
  %21 = vst [vmem:[#allocation2 + $0x48] sm:$0x1] 0.0
  %22 = vst [vmem:[#allocation2 + $0x60] sm:$0x1] 0.0
  %23 = vst [vmem:[#allocation2 + $0x78] sm:$0x1] 0.0
  %24 = vst [vmem:[#allocation2 + $0x90] sm:$0x1] 0.0
  %25 = vst [vmem:[#allocation2 + $0xa8] sm:$0x1] 0.0
  %26 = vst [vmem:[#allocation2 + $0x11] sm:$0x1] 0.0
  %27 = vst [vmem:[#allocation2 + $0x29] sm:$0x1] 0.0
  %28 = vst [vmem:[#allocation2 + $0x41] sm:$0x1] 0.0
  %29 = vst [vmem:[#allocation2 + $0x59] sm:$0x1] 0.0
  %30 = vst [vmem:[#allocation2 + $0x71] sm:$0x1] 0.0
  %31 = vst [vmem:[#allocation2 + $0x89] sm:$0x1] 0.0
  %32 = vst [vmem:[#allocation2 + $0xa1] sm:$0x1] 0.0
  %33 = vst [vmem:[#allocation2 + $0xb9] sm:$0x1] 0.0
  %v34 = vld [vmem:[%s0] sm:$0xf]
  %v35 = vld [vmem:[%s0 + $0x4] sm:$0xf]
  %v36 = vld [vmem:[%s0 + $0x8] sm:$0xf]
  %v37 = vld [vmem:[%s0 + $0xc] sm:$0xf]
  %v38 = vld [vmem:[%s0 + $0x10] sm:$0xf]
  %v39 = vld [vmem:[%s0 + $0x14] sm:$0xf]
  %v40 = vld [vmem:[%s0 + $0x18] sm:$0xf]
  %v41 = vld [vmem:[%s0 + $0x1c] sm:$0xf]
  %v42 = vld [vmem:[%s0 + $0x20] sm:$0xf]
  %v43 = vld [vmem:[%s0 + $0x24] sm:$0xf]
  %v44 = vld [vmem:[%s0 + $0x28] sm:$0xf]
  %v45 = vld [vmem:[%s0 + $0x2c] sm:$0xf]
  %v46 = vld [vmem:[%s0 + $0x30] sm:$0xf]
  %v47 = vld [vmem:[%s0 + $0x34] sm:$0xf]
  %v48 = vld [vmem:[%s0 + $0x38] sm:$0xf]
  %v49 = vld [vmem:[%s0 + $0x3c] sm:$0xf]
  %v50 = vunpack.c.l.bf16 %v34
  %v51 = vunpack.c.l.bf16 %v35
  %v52 = vunpack.c.l.bf16 %v36
  %v53 = vunpack.c.l.bf16 %v37
  %v54 = vunpack.c.l.bf16 %v38
  %v55 = vunpack.c.l.bf16 %v39
  %v56 = vunpack.c.l.bf16 %v40
  %v57 = vunpack.c.l.bf16 %v41
  %v58 = vunpack.c.l.bf16 %v42
  %v59 = vunpack.c.l.bf16 %v43
  %v60 = vunpack.c.l.bf16 %v44
  %v61 = vunpack.c.l.bf16 %v45
  %v62 = vunpack.c.l.bf16 %v46
  %v63 = vunpack.c.l.bf16 %v47
  %v64 = vunpack.c.l.bf16 %v48
  %v65 = vunpack.c.l.bf16 %v49
  %66 = vst [vmem:[#allocation2 + $0x1] sm:$0xff] %v50
  %67 = vst [vmem:[#allocation2 + $0x9] sm:$0xff] %v51
  %68 = vst [vmem:[#allocation2 + $0x19] sm:$0xff] %v52
  %69 = vst [vmem:[#allocation2 + $0x21] sm:$0xff] %v53
  %70 = vst [vmem:[#allocation2 + $0x31] sm:$0xff] %v54
  %71 = vst [vmem:[#allocation2 + $0x39] sm:$0xff] %v55
  %72 = vst [vmem:[#allocation2 + $0x49] sm:$0xff] %v56
  %73 = vst [vmem:[#allocation2 + $0x51] sm:$0xff] %v57
  %74 = vst [vmem:[#allocation2 + $0x61] sm:$0xff] %v58
  %75 = vst [vmem:[#allocation2 + $0x69] sm:$0xff] %v59
  %76 = vst [vmem:[#allocation2 + $0x79] sm:$0xff] %v60
  %77 = vst [vmem:[#allocation2 + $0x81] sm:$0xff] %v61
  %78 = vst [vmem:[#allocation2 + $0x91] sm:$0xff] %v62
  %79 = vst [vmem:[#allocation2 + $0x99] sm:$0xff] %v63
  %80 = vst [vmem:[#allocation2 + $0xa9] sm:$0xff] %v64
  %81 = vst [vmem:[#allocation2 + $0xb1] sm:$0xff] %v65
  %v82 = vld [vmem:[%s3] sm:$0xf]
  %v83 = vld [vmem:[#allocation2] sm:$0xff]
  %v84 = vld [vmem:[#allocation2 + $0x8] sm:$0xff]
  %v85 = vld [vmem:[#allocation2 + $0x18] sm:$0xff]
  %v86 = vld [vmem:[#allocation2 + $0x20] sm:$0xff]
  %v87 = vld [vmem:[#allocation2 + $0x30] sm:$0xff]
  %v88 = vld [vmem:[#allocation2 + $0x38] sm:$0xff]
  %v89 = vld [vmem:[#allocation2 + $0x48] sm:$0xff]
  %v90 = vld [vmem:[#allocation2 + $0x50] sm:$0xff]
  %v91 = vld [vmem:[#allocation2 + $0x60] sm:$0xff]
  %v92 = vld [vmem:[#allocation2 + $0x68] sm:$0xff]
  %v93 = vld [vmem:[#allocation2 + $0x78] sm:$0xff]
  %v94 = vld [vmem:[#allocation2 + $0x80] sm:$0xff]
  %v95 = vld [vmem:[#allocation2 + $0x90] sm:$0xff]
  %v96 = vld [vmem:[#allocation2 + $0x98] sm:$0xff]
  %v97 = vld [vmem:[#allocation2 + $0xa8] sm:$0xff]
  %v98 = vld [vmem:[#allocation2 + $0xb0] sm:$0xff]
  %v99 = vpack.c.bf16 %v84, %v83
  %v100 = vpack.c.bf16 %v86, %v85
  %v101 = vpack.c.bf16 %v88, %v87
  %v102 = vpack.c.bf16 %v90, %v89
  %v103 = vpack.c.bf16 %v92, %v91
  %v104 = vpack.c.bf16 %v94, %v93
  %v105 = vpack.c.bf16 %v96, %v95
  %v106 = vpack.c.bf16 %v98, %v97
  %v107 = vld [vmem:[%s1] sm:$0xf]
  %v108 = vld [vmem:[%s1 + $0x4] sm:$0xf]
  %v109 = vld [vmem:[%s1 + $0x8] sm:$0xf]
  %v110 = vld [vmem:[%s1 + $0xc] sm:$0xf]
  %v111 = vld [vmem:[%s1 + $0x10] sm:$0xf]
  %v112 = vld [vmem:[%s1 + $0x14] sm:$0xf]
  %v113 = vld [vmem:[%s1 + $0x18] sm:$0xf]
  %v114 = vld [vmem:[%s1 + $0x1c] sm:$0xf]
  %v115 = vld [vmem:[%s1 + $0x20] sm:$0xf]
  %v116 = vld [vmem:[%s1 + $0x24] sm:$0xf]
  %v117 = vld [vmem:[%s1 + $0x28] sm:$0xf]
  %v118 = vld [vmem:[%s1 + $0x2c] sm:$0xf]
  %v119 = vld [vmem:[%s1 + $0x30] sm:$0xf]
  %v120 = vld [vmem:[%s1 + $0x34] sm:$0xf]
  %v121 = vld [vmem:[%s1 + $0x38] sm:$0xf]
  %v122 = vld [vmem:[%s1 + $0x3c] sm:$0xf]
  %v123 = vld [vmem:[#allocation2 + $0x1] sm:$0xff]
  %v124 = vld [vmem:[#allocation2 + $0x9] sm:$0xff]
  %v125 = vld [vmem:[#allocation2 + $0x19] sm:$0xff]
  %v126 = vld [vmem:[#allocation2 + $0x21] sm:$0xff]
  %v127 = vld [vmem:[#allocation2 + $0x31] sm:$0xff]
  %v128 = vld [vmem:[#allocation2 + $0x39] sm:$0xff]
  %v129 = vld [vmem:[#allocation2 + $0x49] sm:$0xff]
  %v130 = vld [vmem:[#allocation2 + $0x51] sm:$0xff]
  %v131 = vld [vmem:[#allocation2 + $0x61] sm:$0xff]
  %v132 = vld [vmem:[#allocation2 + $0x69] sm:$0xff]
  %v133 = vld [vmem:[#allocation2 + $0x79] sm:$0xff]
  %v134 = vld [vmem:[#allocation2 + $0x81] sm:$0xff]
  %v135 = vld [vmem:[#allocation2 + $0x91] sm:$0xff]
  %v136 = vld [vmem:[#allocation2 + $0x99] sm:$0xff]
  %v137 = vld [vmem:[#allocation2 + $0xa9] sm:$0xff]
  %v138 = vld [vmem:[#allocation2 + $0xb1] sm:$0xff]
  %v139 = vpack.c.bf16 %v124, %v123
  %v140 = vpack.c.bf16 %v126, %v125
  %v141 = vpack.c.bf16 %v128, %v127
  %v142 = vpack.c.bf16 %v130, %v129
  %v143 = vpack.c.bf16 %v132, %v131
  %v144 = vpack.c.bf16 %v134, %v133
  %v145 = vpack.c.bf16 %v136, %v135
  %v146 = vpack.c.bf16 %v138, %v137
  %s147 = scalar_lea.vmem %s1, 64
  %v148 = vld [vmem:[%s147] sm:$0xf]
  %v149 = vld [vmem:[%s147 + $0x4] sm:$0xf]
  %v150 = vld [vmem:[%s147 + $0x8] sm:$0xf]
  %v151 = vld [vmem:[%s147 + $0xc] sm:$0xf]
  %v152 = vld [vmem:[%s147 + $0x10] sm:$0xf]
  %v153 = vld [vmem:[%s147 + $0x14] sm:$0xf]
  %v154 = vld [vmem:[%s147 + $0x18] sm:$0xf]
  %v155 = vld [vmem:[%s147 + $0x1c] sm:$0xf]
  %v156 = vld [vmem:[%s147 + $0x20] sm:$0xf]
  %v157 = vld [vmem:[%s147 + $0x24] sm:$0xf]
  %v158 = vld [vmem:[%s147 + $0x28] sm:$0xf]
  %v159 = vld [vmem:[%s147 + $0x2c] sm:$0xf]
  %v160 = vld [vmem:[%s147 + $0x30] sm:$0xf]
  %v161 = vld [vmem:[%s147 + $0x34] sm:$0xf]
  %v162 = vld [vmem:[%s147 + $0x38] sm:$0xf]
  %v163 = vld [vmem:[%s147 + $0x3c] sm:$0xf]
  %v180 = vunpack.c.l.b16 %v148
  %v181 = vunpack.c.l.b16 %v149
  %v182 = vunpack.c.l.b16 %v150
  %v183 = vunpack.c.l.b16 %v151
  %v184 = vunpack.c.l.b16 %v152
  %v185 = vunpack.c.l.b16 %v153
  %v186 = vunpack.c.l.b16 %v154
  %v187 = vunpack.c.l.b16 %v155
  %v188 = vunpack.c.l.b16 %v156
  %v189 = vunpack.c.l.b16 %v157
  %v190 = vunpack.c.l.b16 %v158
  %v191 = vunpack.c.l.b16 %v159
  %v192 = vunpack.c.l.b16 %v160
  %v193 = vunpack.c.l.b16 %v161
  %v194 = vunpack.c.l.b16 %v162
  %v195 = vunpack.c.l.b16 %v163
  %v196 = vpack.c.b16 %v181, %v180
  %v197 = vpack.c.b16 %v183, %v182
  %v198 = vpack.c.b16 %v185, %v184
  %v199 = vpack.c.b16 %v187, %v186
  %v200 = vpack.c.b16 %v189, %v188
  %v201 = vpack.c.b16 %v191, %v190
  %v202 = vpack.c.b16 %v193, %v192
  %v203 = vpack.c.b16 %v195, %v194
  %212 = vmatprep.subr.bf16.mxu0 0
  %213 = vmatpush1.bf16.msra.mxu0 %v203
  %214 = vmatprep.subr.bf16.mxu0 0
  %215 = vmatpush1.bf16.msra.mxu0 %v202
  %216 = vmatprep.subr.bf16.mxu0 0
  %217 = vmatpush1.bf16.msra.mxu0 %v201
  %218 = vmatprep.subr.bf16.mxu0 0
  %219 = vmatpush1.bf16.msra.mxu0 %v200
  %220 = vmatprep.subr.bf16.mxu0 0
  %221 = vmatpush1.bf16.msra.mxu0 %v199
  %222 = vmatprep.subr.bf16.mxu0 0
  %223 = vmatpush1.bf16.msra.mxu0 %v198
  %224 = vmatprep.subr.bf16.mxu0 0
  %225 = vmatpush1.bf16.msra.mxu0 %v197
  %226 = vmatprep.subr.bf16.mxu0 0
  %227 = vmatpush1.bf16.msra.mxu0 %v196
  %228 = vmatprep.subr.bf16.mxu0 0
  %229 = vmatpush2.bf16.msra.mxu0 0
  %230 = vmatprep.subr.bf16.mxu0 0
  %231 = vmatpush2.bf16.msra.mxu0 0
  %232 = vmatprep.subr.bf16.mxu0 0
  %233 = vmatpush2.bf16.msra.mxu0 0
  %234 = vmatprep.subr.bf16.mxu0 0
  %235 = vmatpush2.bf16.msra.mxu0 0
  %236 = vmatprep.subr.bf16.mxu0 0
  %237 = vmatpush2.bf16.msra.mxu0 0
  %238 = vmatprep.subr.bf16.mxu0 0
  %239 = vmatpush2.bf16.msra.mxu0 0
  %240 = vmatprep.subr.bf16.mxu0 0
  %241 = vmatpush2.bf16.msra.mxu0 0
  %242 = vmatprep.subr.bf16.mxu0 0
  %243 = vmatpush2.bf16.msra.mxu0 0
  %244 = vmatprep.mubr.bf16.mxu0 0
  %245 = vmatmul.mubr.bf16.gmra.mxu0 %v139
  %v246 = vpop.f32.mrf.mxu0
  %v247 = vadd.f32 0.0, %v246
  %v248 = vpop.f32.mrf.mxu0
  %v249 = vpop.f32.mrf.mxu0
  %v250 = vadd.f32 0.0, %v249
  %v251 = vpop.f32.mrf.mxu0
  %252 = vmatprep.mubr.bf16.mxu0 0
  %253 = vmatmul.mubr.bf16.gmra.mxu0 %v140
  %v254 = vpop.f32.mrf.mxu0
  %v255 = vadd.f32 0.0, %v254
  %v256 = vpop.f32.mrf.mxu0
  %v257 = vpop.f32.mrf.mxu0
  %v258 = vadd.f32 0.0, %v257
  %v259 = vpop.f32.mrf.mxu0
  %260 = vmatprep.mubr.bf16.mxu0 0
  %261 = vmatmul.mubr.bf16.gmra.mxu0 %v141
  %v262 = vpop.f32.mrf.mxu0
  %v263 = vadd.f32 0.0, %v262
  %v264 = vpop.f32.mrf.mxu0
  %v265 = vpop.f32.mrf.mxu0
  %v266 = vadd.f32 0.0, %v265
  %v267 = vpop.f32.mrf.mxu0
  %268 = vmatprep.mubr.bf16.mxu0 0
  %269 = vmatmul.mubr.bf16.gmra.mxu0 %v142
  %v270 = vpop.f32.mrf.mxu0
  %v271 = vadd.f32 0.0, %v270
  %v272 = vpop.f32.mrf.mxu0
  %v273 = vpop.f32.mrf.mxu0
  %v274 = vadd.f32 0.0, %v273
  %v275 = vpop.f32.mrf.mxu0
  %276 = vmatprep.mubr.bf16.mxu0 0
  %277 = vmatmul.mubr.bf16.gmra.mxu0 %v143
  %v278 = vpop.f32.mrf.mxu0
  %v279 = vadd.f32 0.0, %v278
  %v280 = vpop.f32.mrf.mxu0
  %v281 = vpop.f32.mrf.mxu0
  %v282 = vadd.f32 0.0, %v281
  %v283 = vpop.f32.mrf.mxu0
  %284 = vmatprep.mubr.bf16.mxu0 0
  %285 = vmatmul.mubr.bf16.gmra.mxu0 %v144
  %v286 = vpop.f32.mrf.mxu0
  %v287 = vadd.f32 0.0, %v286
  %v288 = vpop.f32.mrf.mxu0
  %v289 = vpop.f32.mrf.mxu0
  %v290 = vadd.f32 0.0, %v289
  %v291 = vpop.f32.mrf.mxu0
  %292 = vmatprep.mubr.bf16.mxu0 0
  %293 = vmatmul.mubr.bf16.gmra.mxu0 %v145
  %v294 = vpop.f32.mrf.mxu0
  %v295 = vadd.f32 0.0, %v294
  %v296 = vpop.f32.mrf.mxu0
  %v297 = vpop.f32.mrf.mxu0
  %v298 = vadd.f32 0.0, %v297
  %v299 = vpop.f32.mrf.mxu0
  %300 = vmatprep.mubr.bf16.mxu0 0
  %301 = vmatmul.mubr.bf16.gmra.mxu0 %v146
  %v302 = vpop.f32.mrf.mxu0
  %v303 = vadd.f32 0.0, %v302
  %v304 = vpop.f32.mrf.mxu0
  %v305 = vpop.f32.mrf.mxu0
  %v306 = vadd.f32 0.0, %v305
  %v307 = vpop.f32.mrf.mxu0
  %308 = vdwg.mxu0
  %v325 = vunpack.c.l.b16 %v107
  %v326 = vunpack.c.l.b16 %v108
  %v327 = vunpack.c.l.b16 %v109
  %v328 = vunpack.c.l.b16 %v110
  %v329 = vunpack.c.l.b16 %v111
  %v330 = vunpack.c.l.b16 %v112
  %v331 = vunpack.c.l.b16 %v113
  %v332 = vunpack.c.l.b16 %v114
  %v333 = vunpack.c.l.b16 %v115
  %v334 = vunpack.c.l.b16 %v116
  %v335 = vunpack.c.l.b16 %v117
  %v336 = vunpack.c.l.b16 %v118
  %v337 = vunpack.c.l.b16 %v119
  %v338 = vunpack.c.l.b16 %v120
  %v339 = vunpack.c.l.b16 %v121
  %v340 = vunpack.c.l.b16 %v122
  %v341 = vpack.c.b16 %v326, %v325
  %v342 = vpack.c.b16 %v328, %v327
  %v343 = vpack.c.b16 %v330, %v329
  %v344 = vpack.c.b16 %v332, %v331
  %v345 = vpack.c.b16 %v334, %v333
  %v346 = vpack.c.b16 %v336, %v335
  %v347 = vpack.c.b16 %v338, %v337
  %v348 = vpack.c.b16 %v340, %v339
  %357 = vmatprep.subr.bf16.mxu0 0
  %358 = vmatpush1.bf16.msra.mxu0 %v348
  %359 = vmatprep.subr.bf16.mxu0 0
  %360 = vmatpush1.bf16.msra.mxu0 %v347
  %361 = vmatprep.subr.bf16.mxu0 0
  %362 = vmatpush1.bf16.msra.mxu0 %v346
  %363 = vmatprep.subr.bf16.mxu0 0
  %364 = vmatpush1.bf16.msra.mxu0 %v345
  %365 = vmatprep.subr.bf16.mxu0 0
  %366 = vmatpush1.bf16.msra.mxu0 %v344
  %367 = vmatprep.subr.bf16.mxu0 0
  %368 = vmatpush1.bf16.msra.mxu0 %v343
  %369 = vmatprep.subr.bf16.mxu0 0
  %370 = vmatpush1.bf16.msra.mxu0 %v342
  %371 = vmatprep.subr.bf16.mxu0 0
  %372 = vmatpush1.bf16.msra.mxu0 %v341
  %373 = vmatprep.subr.bf16.mxu0 0
  %374 = vmatpush2.bf16.msra.mxu0 0
  %375 = vmatprep.subr.bf16.mxu0 0
  %376 = vmatpush2.bf16.msra.mxu0 0
  %377 = vmatprep.subr.bf16.mxu0 0
  %378 = vmatpush2.bf16.msra.mxu0 0
  %379 = vmatprep.subr.bf16.mxu0 0
  %380 = vmatpush2.bf16.msra.mxu0 0
  %381 = vmatprep.subr.bf16.mxu0 0
  %382 = vmatpush2.bf16.msra.mxu0 0
  %383 = vmatprep.subr.bf16.mxu0 0
  %384 = vmatpush2.bf16.msra.mxu0 0
  %385 = vmatprep.subr.bf16.mxu0 0
  %386 = vmatpush2.bf16.msra.mxu0 0
  %387 = vmatprep.subr.bf16.mxu0 0
  %388 = vmatpush2.bf16.msra.mxu0 0
  %389 = vmatprep.mubr.bf16.mxu0 0
  %390 = vmatmul.mubr.bf16.gmra.mxu0 %v99
  %v391 = vpop.f32.mrf.mxu0
  %v392 = vadd.f32 %v247, %v391
  %v393 = vpop.f32.mrf.mxu0
  %v394 = vpop.f32.mrf.mxu0
  %v395 = vadd.f32 %v250, %v394
  %v396 = vpop.f32.mrf.mxu0
  %397 = vmatprep.mubr.bf16.mxu0 0
  %398 = vmatmul.mubr.bf16.gmra.mxu0 %v100
  %v399 = vpop.f32.mrf.mxu0
  %v400 = vadd.f32 %v255, %v399
  %v401 = vpop.f32.mrf.mxu0
  %v402 = vpop.f32.mrf.mxu0
  %v403 = vadd.f32 %v258, %v402
  %v404 = vpop.f32.mrf.mxu0
  %405 = vmatprep.mubr.bf16.mxu0 0
  %406 = vmatmul.mubr.bf16.gmra.mxu0 %v101
  %v407 = vpop.f32.mrf.mxu0
  %v408 = vadd.f32 %v263, %v407
  %v409 = vpop.f32.mrf.mxu0
  %v410 = vpop.f32.mrf.mxu0
  %v411 = vadd.f32 %v266, %v410
  %v412 = vpop.f32.mrf.mxu0
  %413 = vmatprep.mubr.bf16.mxu0 0
  %414 = vmatmul.mubr.bf16.gmra.mxu0 %v102
  %v415 = vpop.f32.mrf.mxu0
  %v416 = vadd.f32 %v271, %v415
  %v417 = vpop.f32.mrf.mxu0
  %v418 = vpop.f32.mrf.mxu0
  %v419 = vadd.f32 %v274, %v418
  %v420 = vpop.f32.mrf.mxu0
  %421 = vmatprep.mubr.bf16.mxu0 0
  %422 = vmatmul.mubr.bf16.gmra.mxu0 %v103
  %v423 = vpop.f32.mrf.mxu0
  %v424 = vadd.f32 %v279, %v423
  %v425 = vpop.f32.mrf.mxu0
  %v426 = vpop.f32.mrf.mxu0
  %v427 = vadd.f32 %v282, %v426
  %v428 = vpop.f32.mrf.mxu0
  %429 = vmatprep.mubr.bf16.mxu0 0
  %430 = vmatmul.mubr.bf16.gmra.mxu0 %v104
  %v431 = vpop.f32.mrf.mxu0
  %v432 = vadd.f32 %v287, %v431
  %v433 = vpop.f32.mrf.mxu0
  %v434 = vpop.f32.mrf.mxu0
  %v435 = vadd.f32 %v290, %v434
  %v436 = vpop.f32.mrf.mxu0
  %437 = vmatprep.mubr.bf16.mxu0 0
  %438 = vmatmul.mubr.bf16.gmra.mxu0 %v105
  %v439 = vpop.f32.mrf.mxu0
  %v440 = vadd.f32 %v295, %v439
  %v441 = vpop.f32.mrf.mxu0
  %v442 = vpop.f32.mrf.mxu0
  %v443 = vadd.f32 %v298, %v442
  %v444 = vpop.f32.mrf.mxu0
  %445 = vmatprep.mubr.bf16.mxu0 0
  %446 = vmatmul.mubr.bf16.gmra.mxu0 %v106
  %v447 = vpop.f32.mrf.mxu0
  %v448 = vadd.f32 %v303, %v447
  %v449 = vpop.f32.mrf.mxu0
  %v450 = vpop.f32.mrf.mxu0
  %v451 = vadd.f32 %v306, %v450
  %v452 = vpop.f32.mrf.mxu0
  %453 = vdwg.mxu0
  %v454 = vld [vmem:[#allocation2 + $0x2] sm:$0xff]
  %v455 = vld [vmem:[#allocation2 + $0xa] sm:$0xff]
  %v456 = vld [vmem:[#allocation2 + $0x1a] sm:$0xff]
  %v457 = vld [vmem:[#allocation2 + $0x22] sm:$0xff]
  %v458 = vld [vmem:[#allocation2 + $0x32] sm:$0xff]
  %v459 = vld [vmem:[#allocation2 + $0x3a] sm:$0xff]
  %v460 = vld [vmem:[#allocation2 + $0x4a] sm:$0xff]
  %v461 = vld [vmem:[#allocation2 + $0x52] sm:$0xff]
  %v462 = vld [vmem:[#allocation2 + $0x62] sm:$0xff]
  %v463 = vld [vmem:[#allocation2 + $0x6a] sm:$0xff]
  %v464 = vld [vmem:[#allocation2 + $0x7a] sm:$0xff]
  %v465 = vld [vmem:[#allocation2 + $0x82] sm:$0xff]
  %v466 = vld [vmem:[#allocation2 + $0x92] sm:$0xff]
  %v467 = vld [vmem:[#allocation2 + $0x9a] sm:$0xff]
  %v468 = vld [vmem:[#allocation2 + $0xaa] sm:$0xff]
  %v469 = vld [vmem:[#allocation2 + $0xb2] sm:$0xff]
  %v470 = vpack.c.bf16 %v455, %v454
  %v471 = vpack.c.bf16 %v457, %v456
  %v472 = vpack.c.bf16 %v459, %v458
  %v473 = vpack.c.bf16 %v461, %v460
  %v474 = vpack.c.bf16 %v463, %v462
  %v475 = vpack.c.bf16 %v465, %v464
  %v476 = vpack.c.bf16 %v467, %v466
  %v477 = vpack.c.bf16 %v469, %v468
  %s478 = scalar_lea.vmem %s1, 128
  %v479 = vld [vmem:[%s478] sm:$0xf]
  %v480 = vld [vmem:[%s478 + $0x4] sm:$0xf]
  %v481 = vld [vmem:[%s478 + $0x8] sm:$0xf]
  %v482 = vld [vmem:[%s478 + $0xc] sm:$0xf]
  %v483 = vld [vmem:[%s478 + $0x10] sm:$0xf]
  %v484 = vld [vmem:[%s478 + $0x14] sm:$0xf]
  %v485 = vld [vmem:[%s478 + $0x18] sm:$0xf]
  %v486 = vld [vmem:[%s478 + $0x1c] sm:$0xf]
  %v487 = vld [vmem:[%s478 + $0x20] sm:$0xf]
  %v488 = vld [vmem:[%s478 + $0x24] sm:$0xf]
  %v489 = vld [vmem:[%s478 + $0x28] sm:$0xf]
  %v490 = vld [vmem:[%s478 + $0x2c] sm:$0xf]
  %v491 = vld [vmem:[%s478 + $0x30] sm:$0xf]
  %v492 = vld [vmem:[%s478 + $0x34] sm:$0xf]
  %v493 = vld [vmem:[%s478 + $0x38] sm:$0xf]
  %v494 = vld [vmem:[%s478 + $0x3c] sm:$0xf]
  %v511 = vunpack.c.l.b16 %v479
  %v512 = vunpack.c.l.b16 %v480
  %v513 = vunpack.c.l.b16 %v481
  %v514 = vunpack.c.l.b16 %v482
  %v515 = vunpack.c.l.b16 %v483
  %v516 = vunpack.c.l.b16 %v484
  %v517 = vunpack.c.l.b16 %v485
  %v518 = vunpack.c.l.b16 %v486
  %v519 = vunpack.c.l.b16 %v487
  %v520 = vunpack.c.l.b16 %v488
  %v521 = vunpack.c.l.b16 %v489
  %v522 = vunpack.c.l.b16 %v490
  %v523 = vunpack.c.l.b16 %v491
  %v524 = vunpack.c.l.b16 %v492
  %v525 = vunpack.c.l.b16 %v493
  %v526 = vunpack.c.l.b16 %v494
  %v527 = vpack.c.b16 %v512, %v511
  %v528 = vpack.c.b16 %v514, %v513
  %v529 = vpack.c.b16 %v516, %v515
  %v530 = vpack.c.b16 %v518, %v517
  %v531 = vpack.c.b16 %v520, %v519
  %v532 = vpack.c.b16 %v522, %v521
  %v533 = vpack.c.b16 %v524, %v523
  %v534 = vpack.c.b16 %v526, %v525
  %543 = vmatprep.subr.bf16.mxu0 0
  %544 = vmatpush1.bf16.msra.mxu0 %v534
  %545 = vmatprep.subr.bf16.mxu0 0
  %546 = vmatpush1.bf16.msra.mxu0 %v533
  %547 = vmatprep.subr.bf16.mxu0 0
  %548 = vmatpush1.bf16.msra.mxu0 %v532
  %549 = vmatprep.subr.bf16.mxu0 0
  %550 = vmatpush1.bf16.msra.mxu0 %v531
  %551 = vmatprep.subr.bf16.mxu0 0
  %552 = vmatpush1.bf16.msra.mxu0 %v530
  %553 = vmatprep.subr.bf16.mxu0 0
  %554 = vmatpush1.bf16.msra.mxu0 %v529
  %555 = vmatprep.subr.bf16.mxu0 0
  %556 = vmatpush1.bf16.msra.mxu0 %v528
  %557 = vmatprep.subr.bf16.mxu0 0
  %558 = vmatpush1.bf16.msra.mxu0 %v527
  %559 = vmatprep.subr.bf16.mxu0 0
  %560 = vmatpush2.bf16.msra.mxu0 0
  %561 = vmatprep.subr.bf16.mxu0 0
  %562 = vmatpush2.bf16.msra.mxu0 0
  %563 = vmatprep.subr.bf16.mxu0 0
  %564 = vmatpush2.bf16.msra.mxu0 0
  %565 = vmatprep.subr.bf16.mxu0 0
  %566 = vmatpush2.bf16.msra.mxu0 0
  %567 = vmatprep.subr.bf16.mxu0 0
  %568 = vmatpush2.bf16.msra.mxu0 0
  %569 = vmatprep.subr.bf16.mxu0 0
  %570 = vmatpush2.bf16.msra.mxu0 0
  %571 = vmatprep.subr.bf16.mxu0 0
  %572 = vmatpush2.bf16.msra.mxu0 0
  %573 = vmatprep.subr.bf16.mxu0 0
  %574 = vmatpush2.bf16.msra.mxu0 0
  %575 = vmatprep.mubr.bf16.mxu0 0
  %576 = vmatmul.mubr.bf16.gmra.mxu0 %v470
  %v577 = vpop.f32.mrf.mxu0
  %v578 = vadd.f32 0.0, %v577
  %v579 = vpop.f32.mrf.mxu0
  %v580 = vpop.f32.mrf.mxu0
  %v581 = vadd.f32 0.0, %v580
  %v582 = vpop.f32.mrf.mxu0
  %583 = vmatprep.mubr.bf16.mxu0 0
  %584 = vmatmul.mubr.bf16.gmra.mxu0 %v471
  %v585 = vpop.f32.mrf.mxu0
  %v586 = vadd.f32 0.0, %v585
  %v587 = vpop.f32.mrf.mxu0
  %v588 = vpop.f32.mrf.mxu0
  %v589 = vadd.f32 0.0, %v588
  %v590 = vpop.f32.mrf.mxu0
  %591 = vmatprep.mubr.bf16.mxu0 0
  %592 = vmatmul.mubr.bf16.gmra.mxu0 %v472
  %v593 = vpop.f32.mrf.mxu0
  %v594 = vadd.f32 0.0, %v593
  %v595 = vpop.f32.mrf.mxu0
  %v596 = vpop.f32.mrf.mxu0
  %v597 = vadd.f32 0.0, %v596
  %v598 = vpop.f32.mrf.mxu0
  %599 = vmatprep.mubr.bf16.mxu0 0
  %600 = vmatmul.mubr.bf16.gmra.mxu0 %v473
  %v601 = vpop.f32.mrf.mxu0
  %v602 = vadd.f32 0.0, %v601
  %v603 = vpop.f32.mrf.mxu0
  %v604 = vpop.f32.mrf.mxu0
  %v605 = vadd.f32 0.0, %v604
  %v606 = vpop.f32.mrf.mxu0
  %607 = vmatprep.mubr.bf16.mxu0 0
  %608 = vmatmul.mubr.bf16.gmra.mxu0 %v474
  %v609 = vpop.f32.mrf.mxu0
  %v610 = vadd.f32 0.0, %v609
  %v611 = vpop.f32.mrf.mxu0
  %v612 = vpop.f32.mrf.mxu0
  %v613 = vadd.f32 0.0, %v612
  %v614 = vpop.f32.mrf.mxu0
  %615 = vmatprep.mubr.bf16.mxu0 0
  %616 = vmatmul.mubr.bf16.gmra.mxu0 %v475
  %v617 = vpop.f32.mrf.mxu0
  %v618 = vadd.f32 0.0, %v617
  %v619 = vpop.f32.mrf.mxu0
  %v620 = vpop.f32.mrf.mxu0
  %v621 = vadd.f32 0.0, %v620
  %v622 = vpop.f32.mrf.mxu0
  %623 = vmatprep.mubr.bf16.mxu0 0
  %624 = vmatmul.mubr.bf16.gmra.mxu0 %v476
  %v625 = vpop.f32.mrf.mxu0
  %v626 = vadd.f32 0.0, %v625
  %v627 = vpop.f32.mrf.mxu0
  %v628 = vpop.f32.mrf.mxu0
  %v629 = vadd.f32 0.0, %v628
  %v630 = vpop.f32.mrf.mxu0
  %631 = vmatprep.mubr.bf16.mxu0 0
  %632 = vmatmul.mubr.bf16.gmra.mxu0 %v477
  %v633 = vpop.f32.mrf.mxu0
  %v634 = vadd.f32 0.0, %v633
  %v635 = vpop.f32.mrf.mxu0
  %v636 = vpop.f32.mrf.mxu0
  %v637 = vadd.f32 0.0, %v636
  %v638 = vpop.f32.mrf.mxu0
  %639 = vdwg.mxu0
  %v640 = vadd.f32 %v392, %v578
  %v641 = vadd.f32 %v395, %v581
  %v642 = vadd.f32 %v400, %v586
  %v643 = vadd.f32 %v403, %v589
  %v644 = vadd.f32 %v408, %v594
  %v645 = vadd.f32 %v411, %v597
  %v646 = vadd.f32 %v416, %v602
  %v647 = vadd.f32 %v419, %v605
  %v648 = vadd.f32 %v424, %v610
  %v649 = vadd.f32 %v427, %v613
  %v650 = vadd.f32 %v432, %v618
  %v651 = vadd.f32 %v435, %v621
  %v652 = vadd.f32 %v440, %v626
  %v653 = vadd.f32 %v443, %v629
  %v654 = vadd.f32 %v448, %v634
  %v655 = vadd.f32 %v451, %v637
  %v656 = vlaneseq
  %v657 = vshrl.u32 %v656, 7
  %v658 = vsub.s32 0, %v657
  %v659 = vrot.slane %v82, %v658
  %v660 = vmul.f32 %v640, %v659
  %v661 = vmul.f32 %v641, %v659
  %v662 = vmul.f32 %v642, %v659
  %v663 = vmul.f32 %v643, %v659
  %v664 = vmul.f32 %v644, %v659
  %v665 = vmul.f32 %v645, %v659
  %v666 = vmul.f32 %v646, %v659
  %v667 = vmul.f32 %v647, %v659
  %v668 = vmul.f32 %v648, %v659
  %v669 = vmul.f32 %v649, %v659
  %v670 = vmul.f32 %v650, %v659
  %v671 = vmul.f32 %v651, %v659
  %v672 = vmul.f32 %v652, %v659
  %v673 = vmul.f32 %v653, %v659
  %v674 = vmul.f32 %v654, %v659
  %v675 = vmul.f32 %v655, %v659
  %v676 = vlaneseq
  %v677 = vshrl.u32 %v676, 7
  %v678 = vsub.s32 1, %v677
  %v679 = vrot.slane %v82, %v678
  %v680 = vadd.f32 %v660, %v679
  %v681 = vadd.f32 %v661, %v679
  %v682 = vadd.f32 %v662, %v679
  %v683 = vadd.f32 %v663, %v679
  %v684 = vadd.f32 %v664, %v679
  %v685 = vadd.f32 %v665, %v679
  %v686 = vadd.f32 %v666, %v679
  %v687 = vadd.f32 %v667, %v679
  %v688 = vadd.f32 %v668, %v679
  %v689 = vadd.f32 %v669, %v679
  %v690 = vadd.f32 %v670, %v679
  %v691 = vadd.f32 %v671, %v679
  %v692 = vadd.f32 %v672, %v679
  %v693 = vadd.f32 %v673, %v679
  %v694 = vadd.f32 %v674, %v679
  %v695 = vadd.f32 %v675, %v679
  %v696 = vmax.f32 %v680, 0.0
  %v697 = vmax.f32 %v681, 0.0
  %v698 = vmax.f32 %v682, 0.0
  %v699 = vmax.f32 %v683, 0.0
  %v700 = vmax.f32 %v684, 0.0
  %v701 = vmax.f32 %v685, 0.0
  %v702 = vmax.f32 %v686, 0.0
  %v703 = vmax.f32 %v687, 0.0
  %v704 = vmax.f32 %v688, 0.0
  %v705 = vmax.f32 %v689, 0.0
  %v706 = vmax.f32 %v690, 0.0
  %v707 = vmax.f32 %v691, 0.0
  %v708 = vmax.f32 %v692, 0.0
  %v709 = vmax.f32 %v693, 0.0
  %v710 = vmax.f32 %v694, 0.0
  %v711 = vmax.f32 %v695, 0.0
  %712 = vst [vmem:[#allocation2 + $0x1] sm:$0xff] %v696
  %713 = vst [vmem:[#allocation2 + $0x9] sm:$0xff] %v697
  %714 = vst [vmem:[#allocation2 + $0x19] sm:$0xff] %v698
  %715 = vst [vmem:[#allocation2 + $0x21] sm:$0xff] %v699
  %716 = vst [vmem:[#allocation2 + $0x31] sm:$0xff] %v700
  %717 = vst [vmem:[#allocation2 + $0x39] sm:$0xff] %v701
  %718 = vst [vmem:[#allocation2 + $0x49] sm:$0xff] %v702
  %719 = vst [vmem:[#allocation2 + $0x51] sm:$0xff] %v703
  %720 = vst [vmem:[#allocation2 + $0x61] sm:$0xff] %v704
  %721 = vst [vmem:[#allocation2 + $0x69] sm:$0xff] %v705
  %722 = vst [vmem:[#allocation2 + $0x79] sm:$0xff] %v706
  %723 = vst [vmem:[#allocation2 + $0x81] sm:$0xff] %v707
  %724 = vst [vmem:[#allocation2 + $0x91] sm:$0xff] %v708
  %725 = vst [vmem:[#allocation2 + $0x99] sm:$0xff] %v709
  %726 = vst [vmem:[#allocation2 + $0xa9] sm:$0xff] %v710
  %727 = vst [vmem:[#allocation2 + $0xb1] sm:$0xff] %v711
  %v728 = vld [vmem:[#allocation2] sm:$0xff]
  %v729 = vld [vmem:[#allocation2 + $0x8] sm:$0xff]
  %v730 = vld [vmem:[#allocation2 + $0x18] sm:$0xff]
  %v731 = vld [vmem:[#allocation2 + $0x20] sm:$0xff]
  %v732 = vld [vmem:[#allocation2 + $0x30] sm:$0xff]
  %v733 = vld [vmem:[#allocation2 + $0x38] sm:$0xff]
  %v734 = vld [vmem:[#allocation2 + $0x48] sm:$0xff]
  %v735 = vld [vmem:[#allocation2 + $0x50] sm:$0xff]
  %v736 = vld [vmem:[#allocation2 + $0x60] sm:$0xff]
  %v737 = vld [vmem:[#allocation2 + $0x68] sm:$0xff]
  %v738 = vld [vmem:[#allocation2 + $0x78] sm:$0xff]
  %v739 = vld [vmem:[#allocation2 + $0x80] sm:$0xff]
  %v740 = vld [vmem:[#allocation2 + $0x90] sm:$0xff]
  %v741 = vld [vmem:[#allocation2 + $0x98] sm:$0xff]
  %v742 = vld [vmem:[#allocation2 + $0xa8] sm:$0xff]
  %v743 = vld [vmem:[#allocation2 + $0xb0] sm:$0xff]
  %v744 = vpack.c.bf16 %v729, %v728
  %v745 = vpack.c.bf16 %v731, %v730
  %v746 = vpack.c.bf16 %v733, %v732
  %v747 = vpack.c.bf16 %v735, %v734
  %v748 = vpack.c.bf16 %v737, %v736
  %v749 = vpack.c.bf16 %v739, %v738
  %v750 = vpack.c.bf16 %v741, %v740
  %v751 = vpack.c.bf16 %v743, %v742
  %v752 = vld [vmem:[%s2] sm:$0xf]
  %v753 = vld [vmem:[%s2 + $0x4] sm:$0xf]
  %v754 = vld [vmem:[%s2 + $0x8] sm:$0xf]
  %v755 = vld [vmem:[%s2 + $0xc] sm:$0xf]
  %v756 = vld [vmem:[%s2 + $0x10] sm:$0xf]
  %v757 = vld [vmem:[%s2 + $0x14] sm:$0xf]
  %v758 = vld [vmem:[%s2 + $0x18] sm:$0xf]
  %v759 = vld [vmem:[%s2 + $0x1c] sm:$0xf]
  %v760 = vld [vmem:[%s2 + $0x20] sm:$0xf]
  %v761 = vld [vmem:[%s2 + $0x24] sm:$0xf]
  %v762 = vld [vmem:[%s2 + $0x28] sm:$0xf]
  %v763 = vld [vmem:[%s2 + $0x2c] sm:$0xf]
  %v764 = vld [vmem:[%s2 + $0x30] sm:$0xf]
  %v765 = vld [vmem:[%s2 + $0x34] sm:$0xf]
  %v766 = vld [vmem:[%s2 + $0x38] sm:$0xf]
  %v767 = vld [vmem:[%s2 + $0x3c] sm:$0xf]
  %v768 = vld [vmem:[#allocation2 + $0x1] sm:$0xff]
  %v769 = vld [vmem:[#allocation2 + $0x9] sm:$0xff]
  %v770 = vld [vmem:[#allocation2 + $0x19] sm:$0xff]
  %v771 = vld [vmem:[#allocation2 + $0x21] sm:$0xff]
  %v772 = vld [vmem:[#allocation2 + $0x31] sm:$0xff]
  %v773 = vld [vmem:[#allocation2 + $0x39] sm:$0xff]
  %v774 = vld [vmem:[#allocation2 + $0x49] sm:$0xff]
  %v775 = vld [vmem:[#allocation2 + $0x51] sm:$0xff]
  %v776 = vld [vmem:[#allocation2 + $0x61] sm:$0xff]
  %v777 = vld [vmem:[#allocation2 + $0x69] sm:$0xff]
  %v778 = vld [vmem:[#allocation2 + $0x79] sm:$0xff]
  %v779 = vld [vmem:[#allocation2 + $0x81] sm:$0xff]
  %v780 = vld [vmem:[#allocation2 + $0x91] sm:$0xff]
  %v781 = vld [vmem:[#allocation2 + $0x99] sm:$0xff]
  %v782 = vld [vmem:[#allocation2 + $0xa9] sm:$0xff]
  %v783 = vld [vmem:[#allocation2 + $0xb1] sm:$0xff]
  %v784 = vpack.c.bf16 %v769, %v768
  %v785 = vpack.c.bf16 %v771, %v770
  %v786 = vpack.c.bf16 %v773, %v772
  %v787 = vpack.c.bf16 %v775, %v774
  %v788 = vpack.c.bf16 %v777, %v776
  %v789 = vpack.c.bf16 %v779, %v778
  %v790 = vpack.c.bf16 %v781, %v780
  %v791 = vpack.c.bf16 %v783, %v782
  %s792 = scalar_lea.vmem %s2, 64
  %v793 = vld [vmem:[%s792] sm:$0xf]
  %v794 = vld [vmem:[%s792 + $0x4] sm:$0xf]
  %v795 = vld [vmem:[%s792 + $0x8] sm:$0xf]
  %v796 = vld [vmem:[%s792 + $0xc] sm:$0xf]
  %v797 = vld [vmem:[%s792 + $0x10] sm:$0xf]
  %v798 = vld [vmem:[%s792 + $0x14] sm:$0xf]
  %v799 = vld [vmem:[%s792 + $0x18] sm:$0xf]
  %v800 = vld [vmem:[%s792 + $0x1c] sm:$0xf]
  %v801 = vld [vmem:[%s792 + $0x20] sm:$0xf]
  %v802 = vld [vmem:[%s792 + $0x24] sm:$0xf]
  %v803 = vld [vmem:[%s792 + $0x28] sm:$0xf]
  %v804 = vld [vmem:[%s792 + $0x2c] sm:$0xf]
  %v805 = vld [vmem:[%s792 + $0x30] sm:$0xf]
  %v806 = vld [vmem:[%s792 + $0x34] sm:$0xf]
  %v807 = vld [vmem:[%s792 + $0x38] sm:$0xf]
  %v808 = vld [vmem:[%s792 + $0x3c] sm:$0xf]
  %v825 = vunpack.c.l.b16 %v793
  %v826 = vunpack.c.l.b16 %v794
  %v827 = vunpack.c.l.b16 %v795
  %v828 = vunpack.c.l.b16 %v796
  %v829 = vunpack.c.l.b16 %v797
  %v830 = vunpack.c.l.b16 %v798
  %v831 = vunpack.c.l.b16 %v799
  %v832 = vunpack.c.l.b16 %v800
  %v833 = vunpack.c.l.b16 %v801
  %v834 = vunpack.c.l.b16 %v802
  %v835 = vunpack.c.l.b16 %v803
  %v836 = vunpack.c.l.b16 %v804
  %v837 = vunpack.c.l.b16 %v805
  %v838 = vunpack.c.l.b16 %v806
  %v839 = vunpack.c.l.b16 %v807
  %v840 = vunpack.c.l.b16 %v808
  %v841 = vpack.c.b16 %v826, %v825
  %v842 = vpack.c.b16 %v828, %v827
  %v843 = vpack.c.b16 %v830, %v829
  %v844 = vpack.c.b16 %v832, %v831
  %v845 = vpack.c.b16 %v834, %v833
  %v846 = vpack.c.b16 %v836, %v835
  %v847 = vpack.c.b16 %v838, %v837
  %v848 = vpack.c.b16 %v840, %v839
  %857 = vmatprep.subr.bf16.mxu0 0
  %858 = vmatpush1.bf16.msra.mxu0 %v848
  %859 = vmatprep.subr.bf16.mxu0 0
  %860 = vmatpush1.bf16.msra.mxu0 %v847
  %861 = vmatprep.subr.bf16.mxu0 0
  %862 = vmatpush1.bf16.msra.mxu0 %v846
  %863 = vmatprep.subr.bf16.mxu0 0
  %864 = vmatpush1.bf16.msra.mxu0 %v845
  %865 = vmatprep.subr.bf16.mxu0 0
  %866 = vmatpush1.bf16.msra.mxu0 %v844
  %867 = vmatprep.subr.bf16.mxu0 0
  %868 = vmatpush1.bf16.msra.mxu0 %v843
  %869 = vmatprep.subr.bf16.mxu0 0
  %870 = vmatpush1.bf16.msra.mxu0 %v842
  %871 = vmatprep.subr.bf16.mxu0 0
  %872 = vmatpush1.bf16.msra.mxu0 %v841
  %873 = vmatprep.subr.bf16.mxu0 0
  %874 = vmatpush2.bf16.msra.mxu0 0
  %875 = vmatprep.subr.bf16.mxu0 0
  %876 = vmatpush2.bf16.msra.mxu0 0
  %877 = vmatprep.subr.bf16.mxu0 0
  %878 = vmatpush2.bf16.msra.mxu0 0
  %879 = vmatprep.subr.bf16.mxu0 0
  %880 = vmatpush2.bf16.msra.mxu0 0
  %881 = vmatprep.subr.bf16.mxu0 0
  %882 = vmatpush2.bf16.msra.mxu0 0
  %883 = vmatprep.subr.bf16.mxu0 0
  %884 = vmatpush2.bf16.msra.mxu0 0
  %885 = vmatprep.subr.bf16.mxu0 0
  %886 = vmatpush2.bf16.msra.mxu0 0
  %887 = vmatprep.subr.bf16.mxu0 0
  %888 = vmatpush2.bf16.msra.mxu0 0
  %889 = vmatprep.mubr.bf16.mxu0 0
  %890 = vmatmul.mubr.bf16.gmra.mxu0 %v784
  %v891 = vpop.f32.mrf.mxu0
  %v892 = vadd.f32 0.0, %v891
  %v893 = vpop.f32.mrf.mxu0
  %v894 = vpop.f32.mrf.mxu0
  %v895 = vadd.f32 0.0, %v894
  %v896 = vpop.f32.mrf.mxu0
  %897 = vmatprep.mubr.bf16.mxu0 0
  %898 = vmatmul.mubr.bf16.gmra.mxu0 %v785
  %v899 = vpop.f32.mrf.mxu0
  %v900 = vadd.f32 0.0, %v899
  %v901 = vpop.f32.mrf.mxu0
  %v902 = vpop.f32.mrf.mxu0
  %v903 = vadd.f32 0.0, %v902
  %v904 = vpop.f32.mrf.mxu0
  %905 = vmatprep.mubr.bf16.mxu0 0
  %906 = vmatmul.mubr.bf16.gmra.mxu0 %v786
  %v907 = vpop.f32.mrf.mxu0
  %v908 = vadd.f32 0.0, %v907
  %v909 = vpop.f32.mrf.mxu0
  %v910 = vpop.f32.mrf.mxu0
  %v911 = vadd.f32 0.0, %v910
  %v912 = vpop.f32.mrf.mxu0
  %913 = vmatprep.mubr.bf16.mxu0 0
  %914 = vmatmul.mubr.bf16.gmra.mxu0 %v787
  %v915 = vpop.f32.mrf.mxu0
  %v916 = vadd.f32 0.0, %v915
  %v917 = vpop.f32.mrf.mxu0
  %v918 = vpop.f32.mrf.mxu0
  %v919 = vadd.f32 0.0, %v918
  %v920 = vpop.f32.mrf.mxu0
  %921 = vmatprep.mubr.bf16.mxu0 0
  %922 = vmatmul.mubr.bf16.gmra.mxu0 %v788
  %v923 = vpop.f32.mrf.mxu0
  %v924 = vadd.f32 0.0, %v923
  %v925 = vpop.f32.mrf.mxu0
  %v926 = vpop.f32.mrf.mxu0
  %v927 = vadd.f32 0.0, %v926
  %v928 = vpop.f32.mrf.mxu0
  %929 = vmatprep.mubr.bf16.mxu0 0
  %930 = vmatmul.mubr.bf16.gmra.mxu0 %v789
  %v931 = vpop.f32.mrf.mxu0
  %v932 = vadd.f32 0.0, %v931
  %v933 = vpop.f32.mrf.mxu0
  %v934 = vpop.f32.mrf.mxu0
  %v935 = vadd.f32 0.0, %v934
  %v936 = vpop.f32.mrf.mxu0
  %937 = vmatprep.mubr.bf16.mxu0 0
  %938 = vmatmul.mubr.bf16.gmra.mxu0 %v790
  %v939 = vpop.f32.mrf.mxu0
  %v940 = vadd.f32 0.0, %v939
  %v941 = vpop.f32.mrf.mxu0
  %v942 = vpop.f32.mrf.mxu0
  %v943 = vadd.f32 0.0, %v942
  %v944 = vpop.f32.mrf.mxu0
  %945 = vmatprep.mubr.bf16.mxu0 0
  %946 = vmatmul.mubr.bf16.gmra.mxu0 %v791
  %v947 = vpop.f32.mrf.mxu0
  %v948 = vadd.f32 0.0, %v947
  %v949 = vpop.f32.mrf.mxu0
  %v950 = vpop.f32.mrf.mxu0
  %v951 = vadd.f32 0.0, %v950
  %v952 = vpop.f32.mrf.mxu0
  %953 = vdwg.mxu0
  %v970 = vunpack.c.l.b16 %v752
  %v971 = vunpack.c.l.b16 %v753
  %v972 = vunpack.c.l.b16 %v754
  %v973 = vunpack.c.l.b16 %v755
  %v974 = vunpack.c.l.b16 %v756
  %v975 = vunpack.c.l.b16 %v757
  %v976 = vunpack.c.l.b16 %v758
  %v977 = vunpack.c.l.b16 %v759
  %v978 = vunpack.c.l.b16 %v760
  %v979 = vunpack.c.l.b16 %v761
  %v980 = vunpack.c.l.b16 %v762
  %v981 = vunpack.c.l.b16 %v763
  %v982 = vunpack.c.l.b16 %v764
  %v983 = vunpack.c.l.b16 %v765
  %v984 = vunpack.c.l.b16 %v766
  %v985 = vunpack.c.l.b16 %v767
  %v986 = vpack.c.b16 %v971, %v970
  %v987 = vpack.c.b16 %v973, %v972
  %v988 = vpack.c.b16 %v975, %v974
  %v989 = vpack.c.b16 %v977, %v976
  %v990 = vpack.c.b16 %v979, %v978
  %v991 = vpack.c.b16 %v981, %v980
  %v992 = vpack.c.b16 %v983, %v982
  %v993 = vpack.c.b16 %v985, %v984
  %1002 = vmatprep.subr.bf16.mxu0 0
  %1003 = vmatpush1.bf16.msra.mxu0 %v993
  %1004 = vmatprep.subr.bf16.mxu0 0
  %1005 = vmatpush1.bf16.msra.mxu0 %v992
  %1006 = vmatprep.subr.bf16.mxu0 0
  %1007 = vmatpush1.bf16.msra.mxu0 %v991
  %1008 = vmatprep.subr.bf16.mxu0 0
  %1009 = vmatpush1.bf16.msra.mxu0 %v990
  %1010 = vmatprep.subr.bf16.mxu0 0
  %1011 = vmatpush1.bf16.msra.mxu0 %v989
  %1012 = vmatprep.subr.bf16.mxu0 0
  %1013 = vmatpush1.bf16.msra.mxu0 %v988
  %1014 = vmatprep.subr.bf16.mxu0 0
  %1015 = vmatpush1.bf16.msra.mxu0 %v987
  %1016 = vmatprep.subr.bf16.mxu0 0
  %1017 = vmatpush1.bf16.msra.mxu0 %v986
  %1018 = vmatprep.subr.bf16.mxu0 0
  %1019 = vmatpush2.bf16.msra.mxu0 0
  %1020 = vmatprep.subr.bf16.mxu0 0
  %1021 = vmatpush2.bf16.msra.mxu0 0
  %1022 = vmatprep.subr.bf16.mxu0 0
  %1023 = vmatpush2.bf16.msra.mxu0 0
  %1024 = vmatprep.subr.bf16.mxu0 0
  %1025 = vmatpush2.bf16.msra.mxu0 0
  %1026 = vmatprep.subr.bf16.mxu0 0
  %1027 = vmatpush2.bf16.msra.mxu0 0
  %1028 = vmatprep.subr.bf16.mxu0 0
  %1029 = vmatpush2.bf16.msra.mxu0 0
  %1030 = vmatprep.subr.bf16.mxu0 0
  %1031 = vmatpush2.bf16.msra.mxu0 0
  %1032 = vmatprep.subr.bf16.mxu0 0
  %1033 = vmatpush2.bf16.msra.mxu0 0
  %1034 = vmatprep.mubr.bf16.mxu0 0
  %1035 = vmatmul.mubr.bf16.gmra.mxu0 %v744
  %v1036 = vpop.f32.mrf.mxu0
  %v1037 = vadd.f32 %v892, %v1036
  %v1038 = vpop.f32.mrf.mxu0
  %v1039 = vpop.f32.mrf.mxu0
  %v1040 = vadd.f32 %v895, %v1039
  %v1041 = vpop.f32.mrf.mxu0
  %1042 = vmatprep.mubr.bf16.mxu0 0
  %1043 = vmatmul.mubr.bf16.gmra.mxu0 %v745
  %v1044 = vpop.f32.mrf.mxu0
  %v1045 = vadd.f32 %v900, %v1044
  %v1046 = vpop.f32.mrf.mxu0
  %v1047 = vpop.f32.mrf.mxu0
  %v1048 = vadd.f32 %v903, %v1047
  %v1049 = vpop.f32.mrf.mxu0
  %1050 = vmatprep.mubr.bf16.mxu0 0
  %1051 = vmatmul.mubr.bf16.gmra.mxu0 %v746
  %v1052 = vpop.f32.mrf.mxu0
  %v1053 = vadd.f32 %v908, %v1052
  %v1054 = vpop.f32.mrf.mxu0
  %v1055 = vpop.f32.mrf.mxu0
  %v1056 = vadd.f32 %v911, %v1055
  %v1057 = vpop.f32.mrf.mxu0
  %1058 = vmatprep.mubr.bf16.mxu0 0
  %1059 = vmatmul.mubr.bf16.gmra.mxu0 %v747
  %v1060 = vpop.f32.mrf.mxu0
  %v1061 = vadd.f32 %v916, %v1060
  %v1062 = vpop.f32.mrf.mxu0
  %v1063 = vpop.f32.mrf.mxu0
  %v1064 = vadd.f32 %v919, %v1063
  %v1065 = vpop.f32.mrf.mxu0
  %1066 = vmatprep.mubr.bf16.mxu0 0
  %1067 = vmatmul.mubr.bf16.gmra.mxu0 %v748
  %v1068 = vpop.f32.mrf.mxu0
  %v1069 = vadd.f32 %v924, %v1068
  %v1070 = vpop.f32.mrf.mxu0
  %v1071 = vpop.f32.mrf.mxu0
  %v1072 = vadd.f32 %v927, %v1071
  %v1073 = vpop.f32.mrf.mxu0
  %1074 = vmatprep.mubr.bf16.mxu0 0
  %1075 = vmatmul.mubr.bf16.gmra.mxu0 %v749
  %v1076 = vpop.f32.mrf.mxu0
  %v1077 = vadd.f32 %v932, %v1076
  %v1078 = vpop.f32.mrf.mxu0
  %v1079 = vpop.f32.mrf.mxu0
  %v1080 = vadd.f32 %v935, %v1079
  %v1081 = vpop.f32.mrf.mxu0
  %1082 = vmatprep.mubr.bf16.mxu0 0
  %1083 = vmatmul.mubr.bf16.gmra.mxu0 %v750
  %v1084 = vpop.f32.mrf.mxu0
  %v1085 = vadd.f32 %v940, %v1084
  %v1086 = vpop.f32.mrf.mxu0
  %v1087 = vpop.f32.mrf.mxu0
  %v1088 = vadd.f32 %v943, %v1087
  %v1089 = vpop.f32.mrf.mxu0
  %1090 = vmatprep.mubr.bf16.mxu0 0
  %1091 = vmatmul.mubr.bf16.gmra.mxu0 %v751
  %v1092 = vpop.f32.mrf.mxu0
  %v1093 = vadd.f32 %v948, %v1092
  %v1094 = vpop.f32.mrf.mxu0
  %v1095 = vpop.f32.mrf.mxu0
  %v1096 = vadd.f32 %v951, %v1095
  %v1097 = vpop.f32.mrf.mxu0
  %1098 = vdwg.mxu0
  %v1099 = vld [vmem:[#allocation2 + $0x2] sm:$0xff]
  %v1100 = vld [vmem:[#allocation2 + $0xa] sm:$0xff]
  %v1101 = vld [vmem:[#allocation2 + $0x1a] sm:$0xff]
  %v1102 = vld [vmem:[#allocation2 + $0x22] sm:$0xff]
  %v1103 = vld [vmem:[#allocation2 + $0x32] sm:$0xff]
  %v1104 = vld [vmem:[#allocation2 + $0x3a] sm:$0xff]
  %v1105 = vld [vmem:[#allocation2 + $0x4a] sm:$0xff]
  %v1106 = vld [vmem:[#allocation2 + $0x52] sm:$0xff]
  %v1107 = vld [vmem:[#allocation2 + $0x62] sm:$0xff]
  %v1108 = vld [vmem:[#allocation2 + $0x6a] sm:$0xff]
  %v1109 = vld [vmem:[#allocation2 + $0x7a] sm:$0xff]
  %v1110 = vld [vmem:[#allocation2 + $0x82] sm:$0xff]
  %v1111 = vld [vmem:[#allocation2 + $0x92] sm:$0xff]
  %v1112 = vld [vmem:[#allocation2 + $0x9a] sm:$0xff]
  %v1113 = vld [vmem:[#allocation2 + $0xaa] sm:$0xff]
  %v1114 = vld [vmem:[#allocation2 + $0xb2] sm:$0xff]
  %v1115 = vpack.c.bf16 %v1100, %v1099
  %v1116 = vpack.c.bf16 %v1102, %v1101
  %v1117 = vpack.c.bf16 %v1104, %v1103
  %v1118 = vpack.c.bf16 %v1106, %v1105
  %v1119 = vpack.c.bf16 %v1108, %v1107
  %v1120 = vpack.c.bf16 %v1110, %v1109
  %v1121 = vpack.c.bf16 %v1112, %v1111
  %v1122 = vpack.c.bf16 %v1114, %v1113
  %s1123 = scalar_lea.vmem %s2, 128
  %v1124 = vld [vmem:[%s1123] sm:$0xf]
  %v1125 = vld [vmem:[%s1123 + $0x4] sm:$0xf]
  %v1126 = vld [vmem:[%s1123 + $0x8] sm:$0xf]
  %v1127 = vld [vmem:[%s1123 + $0xc] sm:$0xf]
  %v1128 = vld [vmem:[%s1123 + $0x10] sm:$0xf]
  %v1129 = vld [vmem:[%s1123 + $0x14] sm:$0xf]
  %v1130 = vld [vmem:[%s1123 + $0x18] sm:$0xf]
  %v1131 = vld [vmem:[%s1123 + $0x1c] sm:$0xf]
  %v1132 = vld [vmem:[%s1123 + $0x20] sm:$0xf]
  %v1133 = vld [vmem:[%s1123 + $0x24] sm:$0xf]
  %v1134 = vld [vmem:[%s1123 + $0x28] sm:$0xf]
  %v1135 = vld [vmem:[%s1123 + $0x2c] sm:$0xf]
  %v1136 = vld [vmem:[%s1123 + $0x30] sm:$0xf]
  %v1137 = vld [vmem:[%s1123 + $0x34] sm:$0xf]
  %v1138 = vld [vmem:[%s1123 + $0x38] sm:$0xf]
  %v1139 = vld [vmem:[%s1123 + $0x3c] sm:$0xf]
  %v1156 = vunpack.c.l.b16 %v1124
  %v1157 = vunpack.c.l.b16 %v1125
  %v1158 = vunpack.c.l.b16 %v1126
  %v1159 = vunpack.c.l.b16 %v1127
  %v1160 = vunpack.c.l.b16 %v1128
  %v1161 = vunpack.c.l.b16 %v1129
  %v1162 = vunpack.c.l.b16 %v1130
  %v1163 = vunpack.c.l.b16 %v1131
  %v1164 = vunpack.c.l.b16 %v1132
  %v1165 = vunpack.c.l.b16 %v1133
  %v1166 = vunpack.c.l.b16 %v1134
  %v1167 = vunpack.c.l.b16 %v1135
  %v1168 = vunpack.c.l.b16 %v1136
  %v1169 = vunpack.c.l.b16 %v1137
  %v1170 = vunpack.c.l.b16 %v1138
  %v1171 = vunpack.c.l.b16 %v1139
  %v1172 = vpack.c.b16 %v1157, %v1156
  %v1173 = vpack.c.b16 %v1159, %v1158
  %v1174 = vpack.c.b16 %v1161, %v1160
  %v1175 = vpack.c.b16 %v1163, %v1162
  %v1176 = vpack.c.b16 %v1165, %v1164
  %v1177 = vpack.c.b16 %v1167, %v1166
  %v1178 = vpack.c.b16 %v1169, %v1168
  %v1179 = vpack.c.b16 %v1171, %v1170
  %1188 = vmatprep.subr.bf16.mxu0 0
  %1189 = vmatpush1.bf16.msra.mxu0 %v1179
  %1190 = vmatprep.subr.bf16.mxu0 0
  %1191 = vmatpush1.bf16.msra.mxu0 %v1178
  %1192 = vmatprep.subr.bf16.mxu0 0
  %1193 = vmatpush1.bf16.msra.mxu0 %v1177
  %1194 = vmatprep.subr.bf16.mxu0 0
  %1195 = vmatpush1.bf16.msra.mxu0 %v1176
  %1196 = vmatprep.subr.bf16.mxu0 0
  %1197 = vmatpush1.bf16.msra.mxu0 %v1175
  %1198 = vmatprep.subr.bf16.mxu0 0
  %1199 = vmatpush1.bf16.msra.mxu0 %v1174
  %1200 = vmatprep.subr.bf16.mxu0 0
  %1201 = vmatpush1.bf16.msra.mxu0 %v1173
  %1202 = vmatprep.subr.bf16.mxu0 0
  %1203 = vmatpush1.bf16.msra.mxu0 %v1172
  %1204 = vmatprep.subr.bf16.mxu0 0
  %1205 = vmatpush2.bf16.msra.mxu0 0
  %1206 = vmatprep.subr.bf16.mxu0 0
  %1207 = vmatpush2.bf16.msra.mxu0 0
  %1208 = vmatprep.subr.bf16.mxu0 0
  %1209 = vmatpush2.bf16.msra.mxu0 0
  %1210 = vmatprep.subr.bf16.mxu0 0
  %1211 = vmatpush2.bf16.msra.mxu0 0
  %1212 = vmatprep.subr.bf16.mxu0 0
  %1213 = vmatpush2.bf16.msra.mxu0 0
  %1214 = vmatprep.subr.bf16.mxu0 0
  %1215 = vmatpush2.bf16.msra.mxu0 0
  %1216 = vmatprep.subr.bf16.mxu0 0
  %1217 = vmatpush2.bf16.msra.mxu0 0
  %1218 = vmatprep.subr.bf16.mxu0 0
  %1219 = vmatpush2.bf16.msra.mxu0 0
  %1220 = vmatprep.mubr.bf16.mxu0 0
  %1221 = vmatmul.mubr.bf16.gmra.mxu0 %v1115
  %v1222 = vpop.f32.mrf.mxu0
  %v1223 = vadd.f32 0.0, %v1222
  %v1224 = vpop.f32.mrf.mxu0
  %v1225 = vpop.f32.mrf.mxu0
  %v1226 = vadd.f32 0.0, %v1225
  %v1227 = vpop.f32.mrf.mxu0
  %1228 = vmatprep.mubr.bf16.mxu0 0
  %1229 = vmatmul.mubr.bf16.gmra.mxu0 %v1116
  %v1230 = vpop.f32.mrf.mxu0
  %v1231 = vadd.f32 0.0, %v1230
  %v1232 = vpop.f32.mrf.mxu0
  %v1233 = vpop.f32.mrf.mxu0
  %v1234 = vadd.f32 0.0, %v1233
  %v1235 = vpop.f32.mrf.mxu0
  %1236 = vmatprep.mubr.bf16.mxu0 0
  %1237 = vmatmul.mubr.bf16.gmra.mxu0 %v1117
  %v1238 = vpop.f32.mrf.mxu0
  %v1239 = vadd.f32 0.0, %v1238
  %v1240 = vpop.f32.mrf.mxu0
  %v1241 = vpop.f32.mrf.mxu0
  %v1242 = vadd.f32 0.0, %v1241
  %v1243 = vpop.f32.mrf.mxu0
  %1244 = vmatprep.mubr.bf16.mxu0 0
  %1245 = vmatmul.mubr.bf16.gmra.mxu0 %v1118
  %v1246 = vpop.f32.mrf.mxu0
  %v1247 = vadd.f32 0.0, %v1246
  %v1248 = vpop.f32.mrf.mxu0
  %v1249 = vpop.f32.mrf.mxu0
  %v1250 = vadd.f32 0.0, %v1249
  %v1251 = vpop.f32.mrf.mxu0
  %1252 = vmatprep.mubr.bf16.mxu0 0
  %1253 = vmatmul.mubr.bf16.gmra.mxu0 %v1119
  %v1254 = vpop.f32.mrf.mxu0
  %v1255 = vadd.f32 0.0, %v1254
  %v1256 = vpop.f32.mrf.mxu0
  %v1257 = vpop.f32.mrf.mxu0
  %v1258 = vadd.f32 0.0, %v1257
  %v1259 = vpop.f32.mrf.mxu0
  %1260 = vmatprep.mubr.bf16.mxu0 0
  %1261 = vmatmul.mubr.bf16.gmra.mxu0 %v1120
  %v1262 = vpop.f32.mrf.mxu0
  %v1263 = vadd.f32 0.0, %v1262
  %v1264 = vpop.f32.mrf.mxu0
  %v1265 = vpop.f32.mrf.mxu0
  %v1266 = vadd.f32 0.0, %v1265
  %v1267 = vpop.f32.mrf.mxu0
  %1268 = vmatprep.mubr.bf16.mxu0 0
  %1269 = vmatmul.mubr.bf16.gmra.mxu0 %v1121
  %v1270 = vpop.f32.mrf.mxu0
  %v1271 = vadd.f32 0.0, %v1270
  %v1272 = vpop.f32.mrf.mxu0
  %v1273 = vpop.f32.mrf.mxu0
  %v1274 = vadd.f32 0.0, %v1273
  %v1275 = vpop.f32.mrf.mxu0
  %1276 = vmatprep.mubr.bf16.mxu0 0
  %1277 = vmatmul.mubr.bf16.gmra.mxu0 %v1122
  %v1278 = vpop.f32.mrf.mxu0
  %v1279 = vadd.f32 0.0, %v1278
  %v1280 = vpop.f32.mrf.mxu0
  %v1281 = vpop.f32.mrf.mxu0
  %v1282 = vadd.f32 0.0, %v1281
  %v1283 = vpop.f32.mrf.mxu0
  %1284 = vdwg.mxu0
  %v1285 = vadd.f32 %v1037, %v1223
  %v1286 = vadd.f32 %v1040, %v1226
  %v1287 = vadd.f32 %v1045, %v1231
  %v1288 = vadd.f32 %v1048, %v1234
  %v1289 = vadd.f32 %v1053, %v1239
  %v1290 = vadd.f32 %v1056, %v1242
  %v1291 = vadd.f32 %v1061, %v1247
  %v1292 = vadd.f32 %v1064, %v1250
  %v1293 = vadd.f32 %v1069, %v1255
  %v1294 = vadd.f32 %v1072, %v1258
  %v1295 = vadd.f32 %v1077, %v1263
  %v1296 = vadd.f32 %v1080, %v1266
  %v1297 = vadd.f32 %v1085, %v1271
  %v1298 = vadd.f32 %v1088, %v1274
  %v1299 = vadd.f32 %v1093, %v1279
  %v1300 = vadd.f32 %v1096, %v1282
  %v1301 = vlaneseq
  %v1302 = vshrl.u32 %v1301, 7
  %v1303 = vsub.s32 2, %v1302
  %v1304 = vrot.slane %v82, %v1303
  %v1305 = vmul.f32 %v1285, %v1304
  %v1306 = vmul.f32 %v1286, %v1304
  %v1307 = vmul.f32 %v1287, %v1304
  %v1308 = vmul.f32 %v1288, %v1304
  %v1309 = vmul.f32 %v1289, %v1304
  %v1310 = vmul.f32 %v1290, %v1304
  %v1311 = vmul.f32 %v1291, %v1304
  %v1312 = vmul.f32 %v1292, %v1304
  %v1313 = vmul.f32 %v1293, %v1304
  %v1314 = vmul.f32 %v1294, %v1304
  %v1315 = vmul.f32 %v1295, %v1304
  %v1316 = vmul.f32 %v1296, %v1304
  %v1317 = vmul.f32 %v1297, %v1304
  %v1318 = vmul.f32 %v1298, %v1304
  %v1319 = vmul.f32 %v1299, %v1304
  %v1320 = vmul.f32 %v1300, %v1304
  %v1321 = vlaneseq
  %v1322 = vshrl.u32 %v1321, 7
  %v1323 = vsub.s32 3, %v1322
  %v1324 = vrot.slane %v82, %v1323
  %v1325 = vadd.f32 %v1305, %v1324
  %v1326 = vadd.f32 %v1306, %v1324
  %v1327 = vadd.f32 %v1307, %v1324
  %v1328 = vadd.f32 %v1308, %v1324
  %v1329 = vadd.f32 %v1309, %v1324
  %v1330 = vadd.f32 %v1310, %v1324
  %v1331 = vadd.f32 %v1311, %v1324
  %v1332 = vadd.f32 %v1312, %v1324
  %v1333 = vadd.f32 %v1313, %v1324
  %v1334 = vadd.f32 %v1314, %v1324
  %v1335 = vadd.f32 %v1315, %v1324
  %v1336 = vadd.f32 %v1316, %v1324
  %v1337 = vadd.f32 %v1317, %v1324
  %v1338 = vadd.f32 %v1318, %v1324
  %v1339 = vadd.f32 %v1319, %v1324
  %v1340 = vadd.f32 %v1320, %v1324
  %v1341 = vadd.f32 %v1325, %v50
  %v1342 = vadd.f32 %v1326, %v51
  %v1343 = vadd.f32 %v1327, %v52
  %v1344 = vadd.f32 %v1328, %v53
  %v1345 = vadd.f32 %v1329, %v54
  %v1346 = vadd.f32 %v1330, %v55
  %v1347 = vadd.f32 %v1331, %v56
  %v1348 = vadd.f32 %v1332, %v57
  %v1349 = vadd.f32 %v1333, %v58
  %v1350 = vadd.f32 %v1334, %v59
  %v1351 = vadd.f32 %v1335, %v60
  %v1352 = vadd.f32 %v1336, %v61
  %v1353 = vadd.f32 %v1337, %v62
  %v1354 = vadd.f32 %v1338, %v63
  %v1355 = vadd.f32 %v1339, %v64
  %v1356 = vadd.f32 %v1340, %v65
  %v1357 = vmax.f32 %v1341, 0.0
  %v1358 = vmax.f32 %v1342, 0.0
  %v1359 = vmax.f32 %v1343, 0.0
  %v1360 = vmax.f32 %v1344, 0.0
  %v1361 = vmax.f32 %v1345, 0.0
  %v1362 = vmax.f32 %v1346, 0.0
  %v1363 = vmax.f32 %v1347, 0.0
  %v1364 = vmax.f32 %v1348, 0.0
  %v1365 = vmax.f32 %v1349, 0.0
  %v1366 = vmax.f32 %v1350, 0.0
  %v1367 = vmax.f32 %v1351, 0.0
  %v1368 = vmax.f32 %v1352, 0.0
  %v1369 = vmax.f32 %v1353, 0.0
  %v1370 = vmax.f32 %v1354, 0.0
  %v1371 = vmax.f32 %v1355, 0.0
  %v1372 = vmax.f32 %v1356, 0.0
  %v1373 = vpack.c.bf16 %v1358, %v1357
  %v1374 = vpack.c.bf16 %v1360, %v1359
  %v1375 = vpack.c.bf16 %v1362, %v1361
  %v1376 = vpack.c.bf16 %v1364, %v1363
  %v1377 = vpack.c.bf16 %v1366, %v1365
  %v1378 = vpack.c.bf16 %v1368, %v1367
  %v1379 = vpack.c.bf16 %v1370, %v1369
  %v1380 = vpack.c.bf16 %v1372, %v1371
  %v1389 = vunpack.c.l.b16 %v1373
  %v1390 = vunpack.c.h.b16 %v1373
  %v1391 = vunpack.c.l.b16 %v1374
  %v1392 = vunpack.c.h.b16 %v1374
  %v1393 = vunpack.c.l.b16 %v1375
  %v1394 = vunpack.c.h.b16 %v1375
  %v1395 = vunpack.c.l.b16 %v1376
  %v1396 = vunpack.c.h.b16 %v1376
  %v1397 = vunpack.c.l.b16 %v1377
  %v1398 = vunpack.c.h.b16 %v1377
  %v1399 = vunpack.c.l.b16 %v1378
  %v1400 = vunpack.c.h.b16 %v1378
  %v1401 = vunpack.c.l.b16 %v1379
  %v1402 = vunpack.c.h.b16 %v1379
  %v1403 = vunpack.c.l.b16 %v1380
  %v1404 = vunpack.c.h.b16 %v1380
  %v1405 = vpack.c.b16 %v1389, %v1389
  %v1406 = vpack.c.b16 %v1390, %v1390
  %v1407 = vpack.c.b16 %v1391, %v1391
  %v1408 = vpack.c.b16 %v1392, %v1392
  %v1409 = vpack.c.b16 %v1393, %v1393
  %v1410 = vpack.c.b16 %v1394, %v1394
  %v1411 = vpack.c.b16 %v1395, %v1395
  %v1412 = vpack.c.b16 %v1396, %v1396
  %v1413 = vpack.c.b16 %v1397, %v1397
  %v1414 = vpack.c.b16 %v1398, %v1398
  %v1415 = vpack.c.b16 %v1399, %v1399
  %v1416 = vpack.c.b16 %v1400, %v1400
  %v1417 = vpack.c.b16 %v1401, %v1401
  %v1418 = vpack.c.b16 %v1402, %v1402
  %v1419 = vpack.c.b16 %v1403, %v1403
  %v1420 = vpack.c.b16 %v1404, %v1404
  %1437 = vst [vmem:[%s4] sm:$0xf] %v1405
  %1438 = vst [vmem:[%s4 + $0x4] sm:$0xf] %v1406
  %1439 = vst [vmem:[%s4 + $0x8] sm:$0xf] %v1407
  %1440 = vst [vmem:[%s4 + $0xc] sm:$0xf] %v1408
  %1441 = vst [vmem:[%s4 + $0x10] sm:$0xf] %v1409
  %1442 = vst [vmem:[%s4 + $0x14] sm:$0xf] %v1410
  %1443 = vst [vmem:[%s4 + $0x18] sm:$0xf] %v1411
  %1444 = vst [vmem:[%s4 + $0x1c] sm:$0xf] %v1412
  %1445 = vst [vmem:[%s4 + $0x20] sm:$0xf] %v1413
  %1446 = vst [vmem:[%s4 + $0x24] sm:$0xf] %v1414
  %1447 = vst [vmem:[%s4 + $0x28] sm:$0xf] %v1415
  %1448 = vst [vmem:[%s4 + $0x2c] sm:$0xf] %v1416
  %1449 = vst [vmem:[%s4 + $0x30] sm:$0xf] %v1417
  %1450 = vst [vmem:[%s4 + $0x34] sm:$0xf] %v1418
  %1451 = vst [vmem:[%s4 + $0x38] sm:$0xf] %v1419
  %1452 = vst [vmem:[%s4 + $0x3c] sm:$0xf] %v1420
  // Predicated region
  $region18: #{basic_block_pallas.1} parent=0 // pred_check
    _
  $region19: #{basic_block_pallas.1} parent=0 // pred_check_branch
    %1454 = sbr.rel (0) target = $region21
  $region20: #{basic_block_pallas.1} parent=0 // pred_region
    _
  $region21: #{basic_block_pallas.1} parent=0 // pred_fallthru
    _
  // Predicated region
  $region22: #{basic_block_pallas.1} parent=0 // pred_check
    _
  $region23: #{basic_block_pallas.1} parent=0 // pred_check_branch
    %1456 = sbr.rel (0) target = $region25
  $region24: #{basic_block_pallas.1} parent=0 // pred_region
    _
  $region25: #{basic_block_pallas.1} parent=0 // pred_fallthru
    _

</llo_original>
